<compile_context>
chip_gen: v5e
topology: v5e:2x2
jax: 0.10.0
libtpu: 0.0.40
codegen_flags: <defaults>
</compile_context>

<pallas_src>
import jax
import jax.numpy as jnp
from jax import lax
from jax.experimental import pallas as pl
from jax.experimental.pallas import tpu as pltpu

# ------------------------- problem sizes (consistent with the module) --------
B = 2            # batch
L = 8            # sequence length
DM = 32          # config['d_model']
DS = 8           # config['d_state']
DCONV = 4        # config['d_conv']
EXPAND = 2
DI = EXPAND * DM             # mamba d_inner = 64
DTR = max(1, -(-DM // 16))   # mamba dt_rank = ceil(d_model/16) = 2
DIN = 16         # dim_in  (self.D)
DOUT = 8         # dim_out

BL = B * L                   # 16  rows for the dense matmuls
BDI = B * DI                 # 128 lane-packed scan width (one f32 vreg)

# ---- packed parameter slab layouts (row offsets 8-aligned where it matters) --
# misc slab: (16, 128)
ROW_A = 0                    # rows 0:8   A^T tiled over batch      (DS, B*DI)
ROW_WCONV = DS               # rows 8:12  depthwise conv weight     (DCONV, DI)
ROW_BCONV = DS + DCONV       # row 12     conv bias                 (1, DI)
ROW_BDT = ROW_BCONV + 1      # row 13     dt_proj bias              (1, DI)
ROW_DVEC = ROW_BDT + 1       # row 14     D tiled over batch        (1, B*DI)
ROW_HEADB = ROW_DVEC + 1     # row 15     out_fc bias [0:DIN], mu_fc bias [DI:DI+DOUT]
MISC_ROWS = 16

# x_proj / dt_proj slab: (32, 64)
XDT_DT = 0                   # rows 0:2    x_proj rows producing dt   (DTR, DI)
XDT_BC = 8                   # rows 8:24   x_proj rows producing B|C  (2*DS, DI)
XDT_WDT = 24                 # rows 24:26  dt_proj.weight.T           (DTR, DI)
XDT_ROWS = 32

# head slab: (112, 32)
HEAD_OUT = 0                 # rows 0:64    out_proj.weight.T  (DI, DM)
HEAD_FC = DI                 # rows 64:96   out_fc.weight.T    (DM, DIN) in lanes 0:DIN
HEAD_MU = DI + DM            # rows 96:112  mu_fc.weight.T     (DIN, DOUT) in lanes 0:DOUT
HEAD_ROWS = DI + DM + DIN

OUT_W = 128                  # lane-dense output: xh in [0,DIN), mu in [DIN,DIN+DOUT)

NT_DIMS = (((1,), (1,)), ((), ()))   # contract dim-1 of both operands (A @ B^T)


def _sigmoid(x):
    return 1.0 / (1.0 + jnp.exp(-x))


def _softplus(x):
    # matches F.softplus default (threshold=20)
    return jnp.where(x > 20.0, x, jnp.log(1.0 + jnp.exp(x)))


def mamba_g2g_kernel(x_ref, win_ref, misc_ref, xdt_ref, head_ref, out_ref):
    x2 = x_ref[...]                     # (B*L, DM), rows ordered b*L + t
    misc = misc_ref[...]                # (16, 128) packed small params
    xdt = xdt_ref[...]                  # (32, 64)  x_proj / dt_proj weights
    head = head_ref[...]                # (112, 32) out_proj / out_fc / mu_fc weights

    a_tiled = misc[ROW_A:ROW_A + DS, :]                      # (DS, B*DI)  A^T tiled
    w_conv = misc[ROW_WCONV:ROW_WCONV + DCONV, 0:DI]         # (DCONV, DI)
    b_conv = misc[ROW_BCONV:ROW_BCONV + 1, 0:DI]             # (1, DI)
    b_dt = misc[ROW_BDT:ROW_BDT + 1, 0:DI]                   # (1, DI)
    d_tiled = misc[ROW_DVEC:ROW_DVEC + 1, :]                 # (1, B*DI)
    b_fc = misc[ROW_HEADB:ROW_HEADB + 1, 0:DIN]              # (1, DIN)
    b_mu = misc[ROW_HEADB:ROW_HEADB + 1, DI:DI + DOUT]       # (1, DOUT)

    # ---- in_proj (no bias): one (16,32)x(32,128) MXU push for the whole batch
    xz = jnp.dot(x2, win_ref[...], preferred_element_type=jnp.float32)   # (BL, 2*DI)
    xc = xz[:, :DI]                     # conv path      (BL, DI)
    zg = xz[:, DI:]                     # gate path z    (BL, DI)

    # ---- causal depthwise conv along t (padding=DCONV-1, truncated), done with
    #      sublane rolls + static batch-boundary mask (XLU/VPU only, no MXU)
    pos = lax.broadcasted_iota(jnp.int32, (BL, DI), 0) & (L - 1)   # t within each sequence
    conv = xc * w_conv[DCONV - 1:DCONV, :]                          # zero-shift tap
    for k in range(DCONV - 1):
        s = DCONV - 1 - k                                           # shift = 3, 2, 1
        shifted = pltpu.roll(xc, shift=s, axis=0)                   # row i <- row i-s (wrapped)
        shifted = jnp.where(pos >= s, shifted, 0.0)                 # zero where roll crossed a batch start
        conv = conv + shifted * w_conv[k:k + 1, :]
    conv = conv + b_conv
    u = conv * _sigmoid(conv)           # SiLU            (BL, DI)
    g = zg * _sigmoid(zg)               # SiLU(z) gate    (BL, DI)

    # ---- x_proj (no bias): dt part in row layout, B/C directly in column layout
    dtr = lax.dot_general(u, xdt[XDT_DT:XDT_DT + DTR, :], NT_DIMS,
                          preferred_element_type=jnp.float32)       # (BL, DTR)
    bct = lax.dot_general(xdt[XDT_BC:XDT_BC + 2 * DS, :], u, NT_DIMS,
                          preferred_element_type=jnp.float32)       # (2*DS, BL)
    bmt = bct[0:DS, :]                  # B^T: (DS, BL), column index b*L+t
    cmt = bct[DS:2 * DS, :]             # C^T: (DS, BL)

    # ---- dt_proj + softplus
    dt = _softplus(jnp.dot(dtr, xdt[XDT_WDT:XDT_WDT + DTR, :],
                           preferred_element_type=jnp.float32) + b_dt)   # (BL, DI)

    # ---- selective scan, batch lane-packed: state h is (DS, B*DI) = one f32 vreg.
    # exp(A*dt), B*(dt*u) outer products and C*gate factors do not depend on h and
    # are hoisted out of the recurrence; the serial loop is one mul+add per step.
    dtu = dt * u                                                    # (BL, DI)
    dA, dBu, cg = [], [], []
    for t in range(L):
        dt_row = jnp.concatenate(
            [dt[b * L + t:b * L + t + 1, :] for b in range(B)], axis=1)       # (1, B*DI)
        dA.append(jnp.exp(a_tiled * dt_row))                                   # (DS, B*DI)
        dBu.append(jnp.concatenate(
            [bmt[:, b * L + t:b * L + t + 1] * dtu[b * L + t:b * L + t + 1, :]
             for b in range(B)], axis=1))                                      # (DS, B*DI)
        cg.append(jnp.concatenate(
            [cmt[:, b * L + t:b * L + t + 1] * g[b * L + t:b * L + t + 1, :]
             for b in range(B)], axis=1))                                      # (DS, B*DI)

    h = jnp.zeros((DS, BDI), jnp.float32)
    acc = jnp.zeros((DS, BDI), jnp.float32)
    for t in range(L):                                   # static unroll, L is small
        h = dA[t] * h + dBu[t]
        acc = acc + cg[t] * h                            # accumulates gate * (C (.) h)
    y_sum = jnp.sum(acc, axis=0, keepdims=True)          # (1, B*DI): sum_t g_t * (C_t . h_t)

    # D*u skip term, gated and summed over t (independent of h)
    ug = u * g
    ug_sum = jnp.concatenate(
        [jnp.sum(ug[b * L:(b + 1) * L, :], axis=0, keepdims=True) for b in range(B)],
        axis=1)                                          # (1, B*DI)
    e_pack = (y_sum + d_tiled * ug_sum) * (1.0 / L)      # mean over t, lane-packed

    # ---- mean-then-out_proj (valid: out_proj is bias-free), batched head ----
    e = jnp.concatenate([e_pack[:, 0:DI], e_pack[:, DI:2 * DI]], axis=0)      # (B, DI)
    e = jnp.dot(e, head[HEAD_OUT:HEAD_OUT + DI, :],
                preferred_element_type=jnp.float32)                           # (B, DM)

    # TODO(synk): the two nn.Dropout layers are stochastic in training; they are
    # the identity at inference and are omitted here.

    xh = jnp.tanh(jnp.dot(e, head[HEAD_FC:HEAD_FC + DM, 0:DIN],
                          preferred_element_type=jnp.float32) + b_fc)         # (B, DIN)
    xh = jnp.where(xh > 0.0, xh, jnp.exp(xh) - 1.0)                           # ELU(alpha=1); tanh bounds input
    mu = jnp.dot(xh, head[HEAD_MU:HEAD_MU + DIN, 0:DOUT],
                 preferred_element_type=jnp.float32) + b_mu                   # (B, DOUT)

    # single lane-dense output slab: xh in lanes [0, DIN), mu in [DIN, DIN+DOUT)
    out_ref[...] = jnp.concatenate(
        [xh, mu, jnp.zeros((B, OUT_W - DIN - DOUT), jnp.float32)], axis=1)


def mamba_g2g_forward(x, edge_index, params):
    """x: (B, L, DM) float32.  Returns (x_head (B, DIN), mu (B, DOUT))."""
    del edge_index                      # unused by the PyTorch forward as well
    w_in_t, misc, xdt, head = params
    batch, seq, dmodel = x.shape
    x2 = x.reshape(batch * seq, dmodel)              # rows ordered b*L + t

    out = pl.pallas_call(
        mamba_g2g_kernel,
        out_shape=jax.ShapeDtypeStruct((batch, OUT_W), jnp.float32),
    )(x2, w_in_t, misc, xdt, head)                   # single invocation, no grid
    return out[:, :DIN], out[:, DIN:DIN + DOUT]


def init_params(key):
    """Deterministic parameter init matching the module's shapes, packed into slabs."""
    ks = jax.random.split(key, 8)
    s = 0.1
    # Mamba.in_proj: Linear(DM, 2*DI, bias=False)  -> pass W.T (DM, 2*DI)
    w_in_t = (jax.random.normal(ks[0], (2 * DI, DM), jnp.float32) * s).T
    # Mamba.conv1d: Conv1d(DI, DI, DCONV, groups=DI): weight (DI,1,DCONV) -> (DCONV, DI)
    w_conv = jnp.transpose(
        jax.random.normal(ks[1], (DI, 1, DCONV), jnp.float32) * s, (2, 1, 0))[:, 0, :]
    b_conv = jnp.zeros((1, DI), jnp.float32)
    # Mamba.x_proj: Linear(DI, DTR + 2*DS, bias=False), kept in PyTorch layout (rows, DI)
    w_xp = jax.random.normal(ks[2], (DTR + 2 * DS, DI), jnp.float32) * s
    # Mamba.dt_proj: Linear(DTR, DI, bias=True) -> W.T (DTR, DI), bias row
    w_dt_t = (jax.random.normal(ks[3], (DI, DTR), jnp.float32) * s).T
    b_dt = jnp.full((1, DI), 0.1, jnp.float32)
    # Mamba A: A = -exp(A_log), A_log = log(arange(1, DS+1)) per channel -> A.T (DS, DI)
    a = jnp.tile(jnp.arange(1, DS + 1, dtype=jnp.float32)[None, :], (DI, 1))
    a_t = (-a).T
    d_vec = jnp.ones((1, DI), jnp.float32)
    # Mamba.out_proj: Linear(DI, DM, bias=False) -> W.T
    w_out_t = (jax.random.normal(ks[4], (DM, DI), jnp.float32) * s).T
    # out_fc: Linear(DM, DIN)
    w_fc_t = (jax.random.normal(ks[5], (DIN, DM), jnp.float32) * s).T
    b_fc = jnp.zeros((1, DIN), jnp.float32)
    # mu_fc: Linear(DIN, DOUT)
    w_mu_t = (jax.random.normal(ks[6], (DOUT, DIN), jnp.float32) * s).T
    b_mu = jnp.zeros((1, DOUT), jnp.float32)
    # NOTE: sigma_fc exists in __init__ but is unused in forward(); not created.

    # ---- pack into lane-dense slabs (few DMAs, one kernel invocation) -------
    misc = jnp.zeros((MISC_ROWS, BDI), jnp.float32)
    misc = misc.at[ROW_A:ROW_A + DS, :].set(jnp.tile(a_t, (1, B)))
    misc = misc.at[ROW_WCONV:ROW_WCONV + DCONV, 0:DI].set(w_conv)
    misc = misc.at[ROW_BCONV, 0:DI].set(b_conv[0])
    misc = misc.at[ROW_BDT, 0:DI].set(b_dt[0])
    misc = misc.at[ROW_DVEC, :].set(jnp.tile(d_vec, (1, B))[0])
    misc = misc.at[ROW_HEADB, 0:DIN].set(b_fc[0])
    misc = misc.at[ROW_HEADB, DI:DI + DOUT].set(b_mu[0])

    xdt = jnp.zeros((XDT_ROWS, DI), jnp.float32)
    xdt = xdt.at[XDT_DT:XDT_DT + DTR, :].set(w_xp[0:DTR, :])        # dt rows of x_proj
    xdt = xdt.at[XDT_BC:XDT_BC + 2 * DS, :].set(w_xp[DTR:, :])      # B | C rows of x_proj
    xdt = xdt.at[XDT_WDT:XDT_WDT + DTR, :].set(w_dt_t)              # dt_proj.weight.T

    head = jnp.zeros((HEAD_ROWS, DM), jnp.float32)
    head = head.at[HEAD_OUT:HEAD_OUT + DI, :].set(w_out_t)
    head = head.at[HEAD_FC:HEAD_FC + DM, 0:DIN].set(w_fc_t)
    head = head.at[HEAD_MU:HEAD_MU + DIN, 0:DOUT].set(w_mu_t)

    return (w_in_t, misc, xdt, head)


if __name__ == "__main__":
    key = jax.random.PRNGKey(0)
    k_in, k_param = jax.random.split(key)

    inp = jax.random.normal(k_in, (B, L, DM), jnp.float32)
    edge_index = jnp.zeros((2, 4), jnp.int32)   # unused, mirrors forward signature
    params = init_params(k_param)

    fwd = jax.jit(mamba_g2g_forward)
    x_head, mu = fwd(inp, edge_index, params)
    jax.block_until_ready((x_head, mu))

    assert x_head.shape == (B, DIN) and mu.shape == (B, DOUT)
    print("KERNEL_OK")
</pallas_src>

<mosaic_0001>
module attributes {stable_mosaic.version = 11 : i64} {
  func.func @mamba_g2g_kernel(%arg0: memref<16x32xf32, #tpu.memory_space<vmem>>, %arg1: memref<32x128xf32, #tpu.memory_space<vmem>>, %arg2: memref<16x128xf32, #tpu.memory_space<vmem>>, %arg3: memref<32x64xf32, #tpu.memory_space<vmem>>, %arg4: memref<112x32xf32, #tpu.memory_space<vmem>>, %arg5: memref<2x128xf32, #tpu.memory_space<vmem>>) attributes {dimension_semantics = [], scalar_prefetch = 0 : i64, scratch_operands = 0 : i64, tpu.core_type = #tpu.core_type<tc>} {
    %c0 = arith.constant 0 : index
    %c0_0 = arith.constant 0 : index
    %0 = vector.load %arg0[%c0, %c0_0] : memref<16x32xf32, #tpu.memory_space<vmem>>, vector<16x32xf32>
    %c0_1 = arith.constant 0 : index
    %c0_2 = arith.constant 0 : index
    %1 = vector.load %arg2[%c0_1, %c0_2] : memref<16x128xf32, #tpu.memory_space<vmem>>, vector<16x128xf32>
    %c0_3 = arith.constant 0 : index
    %c0_4 = arith.constant 0 : index
    %2 = vector.load %arg3[%c0_3, %c0_4] : memref<32x64xf32, #tpu.memory_space<vmem>>, vector<32x64xf32>
    %c0_5 = arith.constant 0 : index
    %c0_6 = arith.constant 0 : index
    %3 = vector.load %arg4[%c0_5, %c0_6] : memref<112x32xf32, #tpu.memory_space<vmem>>, vector<112x32xf32>
    %4 = vector.extract_strided_slice %1 {offsets = [0, 0], sizes = [8, 128], strides = [1, 1]} : vector<16x128xf32> to vector<8x128xf32>
    %5 = vector.extract_strided_slice %1 {offsets = [8, 0], sizes = [4, 64], strides = [1, 1]} : vector<16x128xf32> to vector<4x64xf32>
    %6 = vector.extract_strided_slice %1 {offsets = [12, 0], sizes = [1, 64], strides = [1, 1]} : vector<16x128xf32> to vector<1x64xf32>
    %7 = vector.extract_strided_slice %1 {offsets = [13, 0], sizes = [1, 64], strides = [1, 1]} : vector<16x128xf32> to vector<1x64xf32>
    %8 = vector.extract_strided_slice %1 {offsets = [14, 0], sizes = [1, 128], strides = [1, 1]} : vector<16x128xf32> to vector<1x128xf32>
    %9 = vector.extract_strided_slice %1 {offsets = [15, 0], sizes = [1, 16], strides = [1, 1]} : vector<16x128xf32> to vector<1x16xf32>
    %10 = vector.extract_strided_slice %1 {offsets = [15, 64], sizes = [1, 8], strides = [1, 1]} : vector<16x128xf32> to vector<1x8xf32>
    %c0_7 = arith.constant 0 : index
    %c0_8 = arith.constant 0 : index
    %11 = vector.load %arg1[%c0_7, %c0_8] : memref<32x128xf32, #tpu.memory_space<vmem>>, vector<32x128xf32>
    %cst = arith.constant dense<0.000000e+00> : vector<16x128xf32>
    %12 = tpu.matmul %0, %11, %cst {dimension_numbers = #tpu.dot_dimension_numbers<[1], [0], [0], [1], [0, 0, 1, 1], [], []>} : vector<16x32xf32>, vector<32x128xf32>, vector<16x128xf32> -> vector<16x128xf32>
    %13 = vector.extract_strided_slice %12 {offsets = [0, 0], sizes = [16, 64], strides = [1, 1]} : vector<16x128xf32> to vector<16x64xf32>
    %14 = vector.extract_strided_slice %12 {offsets = [0, 64], sizes = [16, 64], strides = [1, 1]} : vector<16x128xf32> to vector<16x64xf32>
    %15 = tpu.iota {dimensions = array<i32: 0>} : vector<16x64xi32>
    %c7_i32 = arith.constant 7 : i32
    %16 = vector.broadcast %c7_i32 : i32 to vector<16x64xi32>
    %17 = arith.andi %15, %16 : vector<16x64xi32>
    %18 = vector.extract_strided_slice %5 {offsets = [3, 0], sizes = [1, 64], strides = [1, 1]} : vector<4x64xf32> to vector<1x64xf32>
    %19 = vector.broadcast %18 : vector<1x64xf32> to vector<16x64xf32>
    %20 = arith.mulf %13, %19 : vector<16x64xf32>
    %c3_i32 = arith.constant 3 : i32
    %21 = tpu.dynamic_rotate %13 by %c3_i32 dim 0 : vector<16x64xf32>, i32 -> vector<16x64xf32>
    %c3_i32_9 = arith.constant 3 : i32
    %22 = vector.broadcast %c3_i32_9 : i32 to vector<16x64xi32>
    %23 = arith.cmpi sge, %17, %22 : vector<16x64xi32>
    %cst_10 = arith.constant 0.000000e+00 : f32
    %24 = vector.broadcast %cst_10 : f32 to vector<16x64xf32>
    %25 = arith.select %23, %21, %24 : vector<16x64xi1>, vector<16x64xf32>
    %26 = vector.extract_strided_slice %5 {offsets = [0, 0], sizes = [1, 64], strides = [1, 1]} : vector<4x64xf32> to vector<1x64xf32>
    %27 = vector.broadcast %26 : vector<1x64xf32> to vector<16x64xf32>
    %28 = arith.mulf %25, %27 : vector<16x64xf32>
    %29 = arith.addf %20, %28 : vector<16x64xf32>
    %c2_i32 = arith.constant 2 : i32
    %30 = tpu.dynamic_rotate %13 by %c2_i32 dim 0 : vector<16x64xf32>, i32 -> vector<16x64xf32>
    %c2_i32_11 = arith.constant 2 : i32
    %31 = vector.broadcast %c2_i32_11 : i32 to vector<16x64xi32>
    %32 = arith.cmpi sge, %17, %31 : vector<16x64xi32>
    %cst_12 = arith.constant 0.000000e+00 : f32
    %33 = vector.broadcast %cst_12 : f32 to vector<16x64xf32>
    %34 = arith.select %32, %30, %33 : vector<16x64xi1>, vector<16x64xf32>
    %35 = vector.extract_strided_slice %5 {offsets = [1, 0], sizes = [1, 64], strides = [1, 1]} : vector<4x64xf32> to vector<1x64xf32>
    %36 = vector.broadcast %35 : vector<1x64xf32> to vector<16x64xf32>
    %37 = arith.mulf %34, %36 : vector<16x64xf32>
    %38 = arith.addf %29, %37 : vector<16x64xf32>
    %c1_i32 = arith.constant 1 : i32
    %39 = tpu.dynamic_rotate %13 by %c1_i32 dim 0 : vector<16x64xf32>, i32 -> vector<16x64xf32>
    %c1_i32_13 = arith.constant 1 : i32
    %40 = vector.broadcast %c1_i32_13 : i32 to vector<16x64xi32>
    %41 = arith.cmpi sge, %17, %40 : vector<16x64xi32>
    %cst_14 = arith.constant 0.000000e+00 : f32
    %42 = vector.broadcast %cst_14 : f32 to vector<16x64xf32>
    %43 = arith.select %41, %39, %42 : vector<16x64xi1>, vector<16x64xf32>
    %44 = vector.extract_strided_slice %5 {offsets = [2, 0], sizes = [1, 64], strides = [1, 1]} : vector<4x64xf32> to vector<1x64xf32>
    %45 = vector.broadcast %44 : vector<1x64xf32> to vector<16x64xf32>
    %46 = arith.mulf %43, %45 : vector<16x64xf32>
    %47 = arith.addf %38, %46 : vector<16x64xf32>
    %48 = vector.broadcast %6 : vector<1x64xf32> to vector<16x64xf32>
    %49 = arith.addf %47, %48 : vector<16x64xf32>
    %cst_15 = arith.constant 0.000000e+00 : f32
    %50 = vector.broadcast %cst_15 : f32 to vector<16x64xf32>
    %51 = arith.subf %50, %49 : vector<16x64xf32>
    %52 = math.exp %51 : vector<16x64xf32>
    %cst_16 = arith.constant 1.000000e+00 : f32
    %53 = vector.broadcast %cst_16 : f32 to vector<16x64xf32>
    %54 = arith.addf %53, %52 : vector<16x64xf32>
    %cst_17 = arith.constant 1.000000e+00 : f32
    %55 = vector.broadcast %cst_17 : f32 to vector<16x64xf32>
    %56 = arith.divf %55, %54 : vector<16x64xf32>
    %57 = arith.mulf %49, %56 : vector<16x64xf32>
    %cst_18 = arith.constant 0.000000e+00 : f32
    %58 = vector.broadcast %cst_18 : f32 to vector<16x64xf32>
    %59 = arith.subf %58, %14 : vector<16x64xf32>
    %60 = math.exp %59 : vector<16x64xf32>
    %cst_19 = arith.constant 1.000000e+00 : f32
    %61 = vector.broadcast %cst_19 : f32 to vector<16x64xf32>
    %62 = arith.addf %61, %60 : vector<16x64xf32>
    %cst_20 = arith.constant 1.000000e+00 : f32
    %63 = vector.broadcast %cst_20 : f32 to vector<16x64xf32>
    %64 = arith.divf %63, %62 : vector<16x64xf32>
    %65 = arith.mulf %14, %64 : vector<16x64xf32>
    %66 = vector.extract_strided_slice %2 {offsets = [0, 0], sizes = [2, 64], strides = [1, 1]} : vector<32x64xf32> to vector<2x64xf32>
    %cst_21 = arith.constant dense<0.000000e+00> : vector<16x2xf32>
    %67 = tpu.matmul %57, %66, %cst_21 {dimension_numbers = #tpu.dot_dimension_numbers<[1], [1], [0], [0], [0, 0, 1, 0], [], []>} : vector<16x64xf32>, vector<2x64xf32>, vector<16x2xf32> -> vector<16x2xf32>
    %68 = vector.extract_strided_slice %2 {offsets = [8, 0], sizes = [16, 64], strides = [1, 1]} : vector<32x64xf32> to vector<16x64xf32>
    %cst_22 = arith.constant dense<0.000000e+00> : vector<16x16xf32>
    %69 = tpu.matmul %68, %57, %cst_22 {dimension_numbers = #tpu.dot_dimension_numbers<[1], [1], [0], [0], [0, 0, 1, 0], [], []>} : vector<16x64xf32>, vector<16x64xf32>, vector<16x16xf32> -> vector<16x16xf32>
    %70 = vector.extract_strided_slice %69 {offsets = [0, 0], sizes = [8, 16], strides = [1, 1]} : vector<16x16xf32> to vector<8x16xf32>
    %71 = vector.extract_strided_slice %69 {offsets = [8, 0], sizes = [8, 16], strides = [1, 1]} : vector<16x16xf32> to vector<8x16xf32>
    %72 = vector.extract_strided_slice %2 {offsets = [24, 0], sizes = [2, 64], strides = [1, 1]} : vector<32x64xf32> to vector<2x64xf32>
    %cst_23 = arith.constant dense<0.000000e+00> : vector<16x64xf32>
    %73 = tpu.matmul %67, %72, %cst_23 {dimension_numbers = #tpu.dot_dimension_numbers<[1], [0], [0], [1], [0, 0, 1, 1], [], []>} : vector<16x2xf32>, vector<2x64xf32>, vector<16x64xf32> -> vector<16x64xf32>
    %74 = vector.broadcast %7 : vector<1x64xf32> to vector<16x64xf32>
    %75 = arith.addf %73, %74 : vector<16x64xf32>
    %cst_24 = arith.constant 2.000000e+01 : f32
    %76 = vector.broadcast %cst_24 : f32 to vector<16x64xf32>
    %77 = arith.cmpf ogt, %75, %76 : vector<16x64xf32>
    %78 = math.exp %75 : vector<16x64xf32>
    %cst_25 = arith.constant 1.000000e+00 : f32
    %79 = vector.broadcast %cst_25 : f32 to vector<16x64xf32>
    %80 = arith.addf %79, %78 : vector<16x64xf32>
    %81 = math.log %80 : vector<16x64xf32>
    %82 = arith.select %77, %75, %81 : vector<16x64xi1>, vector<16x64xf32>
    %83 = arith.mulf %82, %57 : vector<16x64xf32>
    %84 = vector.extract_strided_slice %82 {offsets = [0, 0], sizes = [1, 64], strides = [1, 1]} : vector<16x64xf32> to vector<1x64xf32>
    %85 = vector.extract_strided_slice %82 {offsets = [8, 0], sizes = [1, 64], strides = [1, 1]} : vector<16x64xf32> to vector<1x64xf32>
    %86 = tpu.concatenate %84, %85 in 1 : vector<1x64xf32>, vector<1x64xf32> -> vector<1x128xf32>
    %87 = vector.broadcast %86 : vector<1x128xf32> to vector<8x128xf32>
    %88 = arith.mulf %4, %87 : vector<8x128xf32>
    %89 = math.exp %88 : vector<8x128xf32>
    %90 = vector.extract_strided_slice %70 {offsets = [0, 0], sizes = [8, 1], strides = [1, 1]} : vector<8x16xf32> to vector<8x1xf32>
    %91 = vector.extract_strided_slice %83 {offsets = [0, 0], sizes = [1, 64], strides = [1, 1]} : vector<16x64xf32> to vector<1x64xf32>
    %92 = vector.broadcast %90 : vector<8x1xf32> to vector<8x64xf32>
    %93 = vector.broadcast %91 : vector<1x64xf32> to vector<8x64xf32>
    %94 = arith.mulf %92, %93 : vector<8x64xf32>
    %95 = vector.extract_strided_slice %70 {offsets = [0, 8], sizes = [8, 1], strides = [1, 1]} : vector<8x16xf32> to vector<8x1xf32>
    %96 = vector.extract_strided_slice %83 {offsets = [8, 0], sizes = [1, 64], strides = [1, 1]} : vector<16x64xf32> to vector<1x64xf32>
    %97 = vector.broadcast %95 : vector<8x1xf32> to vector<8x64xf32>
    %98 = vector.broadcast %96 : vector<1x64xf32> to vector<8x64xf32>
    %99 = arith.mulf %97, %98 : vector<8x64xf32>
    %100 = tpu.concatenate %94, %99 in 1 : vector<8x64xf32>, vector<8x64xf32> -> vector<8x128xf32>
    %101 = vector.extract_strided_slice %71 {offsets = [0, 0], sizes = [8, 1], strides = [1, 1]} : vector<8x16xf32> to vector<8x1xf32>
    %102 = vector.extract_strided_slice %65 {offsets = [0, 0], sizes = [1, 64], strides = [1, 1]} : vector<16x64xf32> to vector<1x64xf32>
    %103 = vector.broadcast %101 : vector<8x1xf32> to vector<8x64xf32>
    %104 = vector.broadcast %102 : vector<1x64xf32> to vector<8x64xf32>
    %105 = arith.mulf %103, %104 : vector<8x64xf32>
    %106 = vector.extract_strided_slice %71 {offsets = [0, 8], sizes = [8, 1], strides = [1, 1]} : vector<8x16xf32> to vector<8x1xf32>
    %107 = vector.extract_strided_slice %65 {offsets = [8, 0], sizes = [1, 64], strides = [1, 1]} : vector<16x64xf32> to vector<1x64xf32>
    %108 = vector.broadcast %106 : vector<8x1xf32> to vector<8x64xf32>
    %109 = vector.broadcast %107 : vector<1x64xf32> to vector<8x64xf32>
    %110 = arith.mulf %108, %109 : vector<8x64xf32>
    %111 = tpu.concatenate %105, %110 in 1 : vector<8x64xf32>, vector<8x64xf32> -> vector<8x128xf32>
    %112 = vector.extract_strided_slice %82 {offsets = [1, 0], sizes = [1, 64], strides = [1, 1]} : vector<16x64xf32> to vector<1x64xf32>
    %113 = vector.extract_strided_slice %82 {offsets = [9, 0], sizes = [1, 64], strides = [1, 1]} : vector<16x64xf32> to vector<1x64xf32>
    %114 = tpu.concatenate %112, %113 in 1 : vector<1x64xf32>, vector<1x64xf32> -> vector<1x128xf32>
    %115 = vector.broadcast %114 : vector<1x128xf32> to vector<8x128xf32>
    %116 = arith.mulf %4, %115 : vector<8x128xf32>
    %117 = math.exp %116 : vector<8x128xf32>
    %118 = vector.extract_strided_slice %70 {offsets = [0, 1], sizes = [8, 1], strides = [1, 1]} : vector<8x16xf32> to vector<8x1xf32>
    %119 = vector.extract_strided_slice %83 {offsets = [1, 0], sizes = [1, 64], strides = [1, 1]} : vector<16x64xf32> to vector<1x64xf32>
    %120 = vector.broadcast %118 : vector<8x1xf32> to vector<8x64xf32>
    %121 = vector.broadcast %119 : vector<1x64xf32> to vector<8x64xf32>
    %122 = arith.mulf %120, %121 : vector<8x64xf32>
    %123 = vector.extract_strided_slice %70 {offsets = [0, 9], sizes = [8, 1], strides = [1, 1]} : vector<8x16xf32> to vector<8x1xf32>
    %124 = vector.extract_strided_slice %83 {offsets = [9, 0], sizes = [1, 64], strides = [1, 1]} : vector<16x64xf32> to vector<1x64xf32>
    %125 = vector.broadcast %123 : vector<8x1xf32> to vector<8x64xf32>
    %126 = vector.broadcast %124 : vector<1x64xf32> to vector<8x64xf32>
    %127 = arith.mulf %125, %126 : vector<8x64xf32>
    %128 = tpu.concatenate %122, %127 in 1 : vector<8x64xf32>, vector<8x64xf32> -> vector<8x128xf32>
    %129 = vector.extract_strided_slice %71 {offsets = [0, 1], sizes = [8, 1], strides = [1, 1]} : vector<8x16xf32> to vector<8x1xf32>
    %130 = vector.extract_strided_slice %65 {offsets = [1, 0], sizes = [1, 64], strides = [1, 1]} : vector<16x64xf32> to vector<1x64xf32>
    %131 = vector.broadcast %129 : vector<8x1xf32> to vector<8x64xf32>
    %132 = vector.broadcast %130 : vector<1x64xf32> to vector<8x64xf32>
    %133 = arith.mulf %131, %132 : vector<8x64xf32>
    %134 = vector.extract_strided_slice %71 {offsets = [0, 9], sizes = [8, 1], strides = [1, 1]} : vector<8x16xf32> to vector<8x1xf32>
    %135 = vector.extract_strided_slice %65 {offsets = [9, 0], sizes = [1, 64], strides = [1, 1]} : vector<16x64xf32> to vector<1x64xf32>
    %136 = vector.broadcast %134 : vector<8x1xf32> to vector<8x64xf32>
    %137 = vector.broadcast %135 : vector<1x64xf32> to vector<8x64xf32>
    %138 = arith.mulf %136, %137 : vector<8x64xf32>
    %139 = tpu.concatenate %133, %138 in 1 : vector<8x64xf32>, vector<8x64xf32> -> vector<8x128xf32>
    %140 = vector.extract_strided_slice %82 {offsets = [2, 0], sizes = [1, 64], strides = [1, 1]} : vector<16x64xf32> to vector<1x64xf32>
    %141 = vector.extract_strided_slice %82 {offsets = [10, 0], sizes = [1, 64], strides = [1, 1]} : vector<16x64xf32> to vector<1x64xf32>
    %142 = tpu.concatenate %140, %141 in 1 : vector<1x64xf32>, vector<1x64xf32> -> vector<1x128xf32>
    %143 = vector.broadcast %142 : vector<1x128xf32> to vector<8x128xf32>
    %144 = arith.mulf %4, %143 : vector<8x128xf32>
    %145 = math.exp %144 : vector<8x128xf32>
    %146 = vector.extract_strided_slice %70 {offsets = [0, 2], sizes = [8, 1], strides = [1, 1]} : vector<8x16xf32> to vector<8x1xf32>
    %147 = vector.extract_strided_slice %83 {offsets = [2, 0], sizes = [1, 64], strides = [1, 1]} : vector<16x64xf32> to vector<1x64xf32>
    %148 = vector.broadcast %146 : vector<8x1xf32> to vector<8x64xf32>
    %149 = vector.broadcast %147 : vector<1x64xf32> to vector<8x64xf32>
    %150 = arith.mulf %148, %149 : vector<8x64xf32>
    %151 = vector.extract_strided_slice %70 {offsets = [0, 10], sizes = [8, 1], strides = [1, 1]} : vector<8x16xf32> to vector<8x1xf32>
    %152 = vector.extract_strided_slice %83 {offsets = [10, 0], sizes = [1, 64], strides = [1, 1]} : vector<16x64xf32> to vector<1x64xf32>
    %153 = vector.broadcast %151 : vector<8x1xf32> to vector<8x64xf32>
    %154 = vector.broadcast %152 : vector<1x64xf32> to vector<8x64xf32>
    %155 = arith.mulf %153, %154 : vector<8x64xf32>
    %156 = tpu.concatenate %150, %155 in 1 : vector<8x64xf32>, vector<8x64xf32> -> vector<8x128xf32>
    %157 = vector.extract_strided_slice %71 {offsets = [0, 2], sizes = [8, 1], strides = [1, 1]} : vector<8x16xf32> to vector<8x1xf32>
    %158 = vector.extract_strided_slice %65 {offsets = [2, 0], sizes = [1, 64], strides = [1, 1]} : vector<16x64xf32> to vector<1x64xf32>
    %159 = vector.broadcast %157 : vector<8x1xf32> to vector<8x64xf32>
    %160 = vector.broadcast %158 : vector<1x64xf32> to vector<8x64xf32>
    %161 = arith.mulf %159, %160 : vector<8x64xf32>
    %162 = vector.extract_strided_slice %71 {offsets = [0, 10], sizes = [8, 1], strides = [1, 1]} : vector<8x16xf32> to vector<8x1xf32>
    %163 = vector.extract_strided_slice %65 {offsets = [10, 0], sizes = [1, 64], strides = [1, 1]} : vector<16x64xf32> to vector<1x64xf32>
    %164 = vector.broadcast %162 : vector<8x1xf32> to vector<8x64xf32>
    %165 = vector.broadcast %163 : vector<1x64xf32> to vector<8x64xf32>
    %166 = arith.mulf %164, %165 : vector<8x64xf32>
    %167 = tpu.concatenate %161, %166 in 1 : vector<8x64xf32>, vector<8x64xf32> -> vector<8x128xf32>
    %168 = vector.extract_strided_slice %82 {offsets = [3, 0], sizes = [1, 64], strides = [1, 1]} : vector<16x64xf32> to vector<1x64xf32>
    %169 = vector.extract_strided_slice %82 {offsets = [11, 0], sizes = [1, 64], strides = [1, 1]} : vector<16x64xf32> to vector<1x64xf32>
    %170 = tpu.concatenate %168, %169 in 1 : vector<1x64xf32>, vector<1x64xf32> -> vector<1x128xf32>
    %171 = vector.broadcast %170 : vector<1x128xf32> to vector<8x128xf32>
    %172 = arith.mulf %4, %171 : vector<8x128xf32>
    %173 = math.exp %172 : vector<8x128xf32>
    %174 = vector.extract_strided_slice %70 {offsets = [0, 3], sizes = [8, 1], strides = [1, 1]} : vector<8x16xf32> to vector<8x1xf32>
    %175 = vector.extract_strided_slice %83 {offsets = [3, 0], sizes = [1, 64], strides = [1, 1]} : vector<16x64xf32> to vector<1x64xf32>
    %176 = vector.broadcast %174 : vector<8x1xf32> to vector<8x64xf32>
    %177 = vector.broadcast %175 : vector<1x64xf32> to vector<8x64xf32>
    %178 = arith.mulf %176, %177 : vector<8x64xf32>
    %179 = vector.extract_strided_slice %70 {offsets = [0, 11], sizes = [8, 1], strides = [1, 1]} : vector<8x16xf32> to vector<8x1xf32>
    %180 = vector.extract_strided_slice %83 {offsets = [11, 0], sizes = [1, 64], strides = [1, 1]} : vector<16x64xf32> to vector<1x64xf32>
    %181 = vector.broadcast %179 : vector<8x1xf32> to vector<8x64xf32>
    %182 = vector.broadcast %180 : vector<1x64xf32> to vector<8x64xf32>
    %183 = arith.mulf %181, %182 : vector<8x64xf32>
    %184 = tpu.concatenate %178, %183 in 1 : vector<8x64xf32>, vector<8x64xf32> -> vector<8x128xf32>
    %185 = vector.extract_strided_slice %71 {offsets = [0, 3], sizes = [8, 1], strides = [1, 1]} : vector<8x16xf32> to vector<8x1xf32>
    %186 = vector.extract_strided_slice %65 {offsets = [3, 0], sizes = [1, 64], strides = [1, 1]} : vector<16x64xf32> to vector<1x64xf32>
    %187 = vector.broadcast %185 : vector<8x1xf32> to vector<8x64xf32>
    %188 = vector.broadcast %186 : vector<1x64xf32> to vector<8x64xf32>
    %189 = arith.mulf %187, %188 : vector<8x64xf32>
    %190 = vector.extract_strided_slice %71 {offsets = [0, 11], sizes = [8, 1], strides = [1, 1]} : vector<8x16xf32> to vector<8x1xf32>
    %191 = vector.extract_strided_slice %65 {offsets = [11, 0], sizes = [1, 64], strides = [1, 1]} : vector<16x64xf32> to vector<1x64xf32>
    %192 = vector.broadcast %190 : vector<8x1xf32> to vector<8x64xf32>
    %193 = vector.broadcast %191 : vector<1x64xf32> to vector<8x64xf32>
    %194 = arith.mulf %192, %193 : vector<8x64xf32>
    %195 = tpu.concatenate %189, %194 in 1 : vector<8x64xf32>, vector<8x64xf32> -> vector<8x128xf32>
    %196 = vector.extract_strided_slice %82 {offsets = [4, 0], sizes = [1, 64], strides = [1, 1]} : vector<16x64xf32> to vector<1x64xf32>
    %197 = vector.extract_strided_slice %82 {offsets = [12, 0], sizes = [1, 64], strides = [1, 1]} : vector<16x64xf32> to vector<1x64xf32>
    %198 = tpu.concatenate %196, %197 in 1 : vector<1x64xf32>, vector<1x64xf32> -> vector<1x128xf32>
    %199 = vector.broadcast %198 : vector<1x128xf32> to vector<8x128xf32>
    %200 = arith.mulf %4, %199 : vector<8x128xf32>
    %201 = math.exp %200 : vector<8x128xf32>
    %202 = vector.extract_strided_slice %70 {offsets = [0, 4], sizes = [8, 1], strides = [1, 1]} : vector<8x16xf32> to vector<8x1xf32>
    %203 = vector.extract_strided_slice %83 {offsets = [4, 0], sizes = [1, 64], strides = [1, 1]} : vector<16x64xf32> to vector<1x64xf32>
    %204 = vector.broadcast %202 : vector<8x1xf32> to vector<8x64xf32>
    %205 = vector.broadcast %203 : vector<1x64xf32> to vector<8x64xf32>
    %206 = arith.mulf %204, %205 : vector<8x64xf32>
    %207 = vector.extract_strided_slice %70 {offsets = [0, 12], sizes = [8, 1], strides = [1, 1]} : vector<8x16xf32> to vector<8x1xf32>
    %208 = vector.extract_strided_slice %83 {offsets = [12, 0], sizes = [1, 64], strides = [1, 1]} : vector<16x64xf32> to vector<1x64xf32>
    %209 = vector.broadcast %207 : vector<8x1xf32> to vector<8x64xf32>
    %210 = vector.broadcast %208 : vector<1x64xf32> to vector<8x64xf32>
    %211 = arith.mulf %209, %210 : vector<8x64xf32>
    %212 = tpu.concatenate %206, %211 in 1 : vector<8x64xf32>, vector<8x64xf32> -> vector<8x128xf32>
    %213 = vector.extract_strided_slice %71 {offsets = [0, 4], sizes = [8, 1], strides = [1, 1]} : vector<8x16xf32> to vector<8x1xf32>
    %214 = vector.extract_strided_slice %65 {offsets = [4, 0], sizes = [1, 64], strides = [1, 1]} : vector<16x64xf32> to vector<1x64xf32>
    %215 = vector.broadcast %213 : vector<8x1xf32> to vector<8x64xf32>
    %216 = vector.broadcast %214 : vector<1x64xf32> to vector<8x64xf32>
    %217 = arith.mulf %215, %216 : vector<8x64xf32>
    %218 = vector.extract_strided_slice %71 {offsets = [0, 12], sizes = [8, 1], strides = [1, 1]} : vector<8x16xf32> to vector<8x1xf32>
    %219 = vector.extract_strided_slice %65 {offsets = [12, 0], sizes = [1, 64], strides = [1, 1]} : vector<16x64xf32> to vector<1x64xf32>
    %220 = vector.broadcast %218 : vector<8x1xf32> to vector<8x64xf32>
    %221 = vector.broadcast %219 : vector<1x64xf32> to vector<8x64xf32>
    %222 = arith.mulf %220, %221 : vector<8x64xf32>
    %223 = tpu.concatenate %217, %222 in 1 : vector<8x64xf32>, vector<8x64xf32> -> vector<8x128xf32>
    %224 = vector.extract_strided_slice %82 {offsets = [5, 0], sizes = [1, 64], strides = [1, 1]} : vector<16x64xf32> to vector<1x64xf32>
    %225 = vector.extract_strided_slice %82 {offsets = [13, 0], sizes = [1, 64], strides = [1, 1]} : vector<16x64xf32> to vector<1x64xf32>
    %226 = tpu.concatenate %224, %225 in 1 : vector<1x64xf32>, vector<1x64xf32> -> vector<1x128xf32>
    %227 = vector.broadcast %226 : vector<1x128xf32> to vector<8x128xf32>
    %228 = arith.mulf %4, %227 : vector<8x128xf32>
    %229 = math.exp %228 : vector<8x128xf32>
    %230 = vector.extract_strided_slice %70 {offsets = [0, 5], sizes = [8, 1], strides = [1, 1]} : vector<8x16xf32> to vector<8x1xf32>
    %231 = vector.extract_strided_slice %83 {offsets = [5, 0], sizes = [1, 64], strides = [1, 1]} : vector<16x64xf32> to vector<1x64xf32>
    %232 = vector.broadcast %230 : vector<8x1xf32> to vector<8x64xf32>
    %233 = vector.broadcast %231 : vector<1x64xf32> to vector<8x64xf32>
    %234 = arith.mulf %232, %233 : vector<8x64xf32>
    %235 = vector.extract_strided_slice %70 {offsets = [0, 13], sizes = [8, 1], strides = [1, 1]} : vector<8x16xf32> to vector<8x1xf32>
    %236 = vector.extract_strided_slice %83 {offsets = [13, 0], sizes = [1, 64], strides = [1, 1]} : vector<16x64xf32> to vector<1x64xf32>
    %237 = vector.broadcast %235 : vector<8x1xf32> to vector<8x64xf32>
    %238 = vector.broadcast %236 : vector<1x64xf32> to vector<8x64xf32>
    %239 = arith.mulf %237, %238 : vector<8x64xf32>
    %240 = tpu.concatenate %234, %239 in 1 : vector<8x64xf32>, vector<8x64xf32> -> vector<8x128xf32>
    %241 = vector.extract_strided_slice %71 {offsets = [0, 5], sizes = [8, 1], strides = [1, 1]} : vector<8x16xf32> to vector<8x1xf32>
    %242 = vector.extract_strided_slice %65 {offsets = [5, 0], sizes = [1, 64], strides = [1, 1]} : vector<16x64xf32> to vector<1x64xf32>
    %243 = vector.broadcast %241 : vector<8x1xf32> to vector<8x64xf32>
    %244 = vector.broadcast %242 : vector<1x64xf32> to vector<8x64xf32>
    %245 = arith.mulf %243, %244 : vector<8x64xf32>
    %246 = vector.extract_strided_slice %71 {offsets = [0, 13], sizes = [8, 1], strides = [1, 1]} : vector<8x16xf32> to vector<8x1xf32>
    %247 = vector.extract_strided_slice %65 {offsets = [13, 0], sizes = [1, 64], strides = [1, 1]} : vector<16x64xf32> to vector<1x64xf32>
    %248 = vector.broadcast %246 : vector<8x1xf32> to vector<8x64xf32>
    %249 = vector.broadcast %247 : vector<1x64xf32> to vector<8x64xf32>
    %250 = arith.mulf %248, %249 : vector<8x64xf32>
    %251 = tpu.concatenate %245, %250 in 1 : vector<8x64xf32>, vector<8x64xf32> -> vector<8x128xf32>
    %252 = vector.extract_strided_slice %82 {offsets = [6, 0], sizes = [1, 64], strides = [1, 1]} : vector<16x64xf32> to vector<1x64xf32>
    %253 = vector.extract_strided_slice %82 {offsets = [14, 0], sizes = [1, 64], strides = [1, 1]} : vector<16x64xf32> to vector<1x64xf32>
    %254 = tpu.concatenate %252, %253 in 1 : vector<1x64xf32>, vector<1x64xf32> -> vector<1x128xf32>
    %255 = vector.broadcast %254 : vector<1x128xf32> to vector<8x128xf32>
    %256 = arith.mulf %4, %255 : vector<8x128xf32>
    %257 = math.exp %256 : vector<8x128xf32>
    %258 = vector.extract_strided_slice %70 {offsets = [0, 6], sizes = [8, 1], strides = [1, 1]} : vector<8x16xf32> to vector<8x1xf32>
    %259 = vector.extract_strided_slice %83 {offsets = [6, 0], sizes = [1, 64], strides = [1, 1]} : vector<16x64xf32> to vector<1x64xf32>
    %260 = vector.broadcast %258 : vector<8x1xf32> to vector<8x64xf32>
    %261 = vector.broadcast %259 : vector<1x64xf32> to vector<8x64xf32>
    %262 = arith.mulf %260, %261 : vector<8x64xf32>
    %263 = vector.extract_strided_slice %70 {offsets = [0, 14], sizes = [8, 1], strides = [1, 1]} : vector<8x16xf32> to vector<8x1xf32>
    %264 = vector.extract_strided_slice %83 {offsets = [14, 0], sizes = [1, 64], strides = [1, 1]} : vector<16x64xf32> to vector<1x64xf32>
    %265 = vector.broadcast %263 : vector<8x1xf32> to vector<8x64xf32>
    %266 = vector.broadcast %264 : vector<1x64xf32> to vector<8x64xf32>
    %267 = arith.mulf %265, %266 : vector<8x64xf32>
    %268 = tpu.concatenate %262, %267 in 1 : vector<8x64xf32>, vector<8x64xf32> -> vector<8x128xf32>
    %269 = vector.extract_strided_slice %71 {offsets = [0, 6], sizes = [8, 1], strides = [1, 1]} : vector<8x16xf32> to vector<8x1xf32>
    %270 = vector.extract_strided_slice %65 {offsets = [6, 0], sizes = [1, 64], strides = [1, 1]} : vector<16x64xf32> to vector<1x64xf32>
    %271 = vector.broadcast %269 : vector<8x1xf32> to vector<8x64xf32>
    %272 = vector.broadcast %270 : vector<1x64xf32> to vector<8x64xf32>
    %273 = arith.mulf %271, %272 : vector<8x64xf32>
    %274 = vector.extract_strided_slice %71 {offsets = [0, 14], sizes = [8, 1], strides = [1, 1]} : vector<8x16xf32> to vector<8x1xf32>
    %275 = vector.extract_strided_slice %65 {offsets = [14, 0], sizes = [1, 64], strides = [1, 1]} : vector<16x64xf32> to vector<1x64xf32>
    %276 = vector.broadcast %274 : vector<8x1xf32> to vector<8x64xf32>
    %277 = vector.broadcast %275 : vector<1x64xf32> to vector<8x64xf32>
    %278 = arith.mulf %276, %277 : vector<8x64xf32>
    %279 = tpu.concatenate %273, %278 in 1 : vector<8x64xf32>, vector<8x64xf32> -> vector<8x128xf32>
    %280 = vector.extract_strided_slice %82 {offsets = [7, 0], sizes = [1, 64], strides = [1, 1]} : vector<16x64xf32> to vector<1x64xf32>
    %281 = vector.extract_strided_slice %82 {offsets = [15, 0], sizes = [1, 64], strides = [1, 1]} : vector<16x64xf32> to vector<1x64xf32>
    %282 = tpu.concatenate %280, %281 in 1 : vector<1x64xf32>, vector<1x64xf32> -> vector<1x128xf32>
    %283 = vector.broadcast %282 : vector<1x128xf32> to vector<8x128xf32>
    %284 = arith.mulf %4, %283 : vector<8x128xf32>
    %285 = math.exp %284 : vector<8x128xf32>
    %286 = vector.extract_strided_slice %70 {offsets = [0, 7], sizes = [8, 1], strides = [1, 1]} : vector<8x16xf32> to vector<8x1xf32>
    %287 = vector.extract_strided_slice %83 {offsets = [7, 0], sizes = [1, 64], strides = [1, 1]} : vector<16x64xf32> to vector<1x64xf32>
    %288 = vector.broadcast %286 : vector<8x1xf32> to vector<8x64xf32>
    %289 = vector.broadcast %287 : vector<1x64xf32> to vector<8x64xf32>
    %290 = arith.mulf %288, %289 : vector<8x64xf32>
    %291 = vector.extract_strided_slice %70 {offsets = [0, 15], sizes = [8, 1], strides = [1, 1]} : vector<8x16xf32> to vector<8x1xf32>
    %292 = vector.extract_strided_slice %83 {offsets = [15, 0], sizes = [1, 64], strides = [1, 1]} : vector<16x64xf32> to vector<1x64xf32>
    %293 = vector.broadcast %291 : vector<8x1xf32> to vector<8x64xf32>
    %294 = vector.broadcast %292 : vector<1x64xf32> to vector<8x64xf32>
    %295 = arith.mulf %293, %294 : vector<8x64xf32>
    %296 = tpu.concatenate %290, %295 in 1 : vector<8x64xf32>, vector<8x64xf32> -> vector<8x128xf32>
    %297 = vector.extract_strided_slice %71 {offsets = [0, 7], sizes = [8, 1], strides = [1, 1]} : vector<8x16xf32> to vector<8x1xf32>
    %298 = vector.extract_strided_slice %65 {offsets = [7, 0], sizes = [1, 64], strides = [1, 1]} : vector<16x64xf32> to vector<1x64xf32>
    %299 = vector.broadcast %297 : vector<8x1xf32> to vector<8x64xf32>
    %300 = vector.broadcast %298 : vector<1x64xf32> to vector<8x64xf32>
    %301 = arith.mulf %299, %300 : vector<8x64xf32>
    %302 = vector.extract_strided_slice %71 {offsets = [0, 15], sizes = [8, 1], strides = [1, 1]} : vector<8x16xf32> to vector<8x1xf32>
    %303 = vector.extract_strided_slice %65 {offsets = [15, 0], sizes = [1, 64], strides = [1, 1]} : vector<16x64xf32> to vector<1x64xf32>
    %304 = vector.broadcast %302 : vector<8x1xf32> to vector<8x64xf32>
    %305 = vector.broadcast %303 : vector<1x64xf32> to vector<8x64xf32>
    %306 = arith.mulf %304, %305 : vector<8x64xf32>
    %307 = tpu.concatenate %301, %306 in 1 : vector<8x64xf32>, vector<8x64xf32> -> vector<8x128xf32>
    %cst_26 = arith.constant 0.000000e+00 : f32
    %308 = vector.broadcast %cst_26 : f32 to vector<8x128xf32>
    %cst_27 = arith.constant 0.000000e+00 : f32
    %309 = vector.broadcast %cst_27 : f32 to vector<8x128xf32>
    %310 = arith.mulf %89, %308 : vector<8x128xf32>
    %311 = arith.addf %310, %100 : vector<8x128xf32>
    %312 = arith.mulf %111, %311 : vector<8x128xf32>
    %313 = arith.addf %309, %312 : vector<8x128xf32>
    %314 = arith.mulf %117, %311 : vector<8x128xf32>
    %315 = arith.addf %314, %128 : vector<8x128xf32>
    %316 = arith.mulf %139, %315 : vector<8x128xf32>
    %317 = arith.addf %313, %316 : vector<8x128xf32>
    %318 = arith.mulf %145, %315 : vector<8x128xf32>
    %319 = arith.addf %318, %156 : vector<8x128xf32>
    %320 = arith.mulf %167, %319 : vector<8x128xf32>
    %321 = arith.addf %317, %320 : vector<8x128xf32>
    %322 = arith.mulf %173, %319 : vector<8x128xf32>
    %323 = arith.addf %322, %184 : vector<8x128xf32>
    %324 = arith.mulf %195, %323 : vector<8x128xf32>
    %325 = arith.addf %321, %324 : vector<8x128xf32>
    %326 = arith.mulf %201, %323 : vector<8x128xf32>
    %327 = arith.addf %326, %212 : vector<8x128xf32>
    %328 = arith.mulf %223, %327 : vector<8x128xf32>
    %329 = arith.addf %325, %328 : vector<8x128xf32>
    %330 = arith.mulf %229, %327 : vector<8x128xf32>
    %331 = arith.addf %330, %240 : vector<8x128xf32>
    %332 = arith.mulf %251, %331 : vector<8x128xf32>
    %333 = arith.addf %329, %332 : vector<8x128xf32>
    %334 = arith.mulf %257, %331 : vector<8x128xf32>
    %335 = arith.addf %334, %268 : vector<8x128xf32>
    %336 = arith.mulf %279, %335 : vector<8x128xf32>
    %337 = arith.addf %333, %336 : vector<8x128xf32>
    %338 = arith.mulf %285, %335 : vector<8x128xf32>
    %339 = arith.addf %338, %296 : vector<8x128xf32>
    %340 = arith.mulf %307, %339 : vector<8x128xf32>
    %341 = arith.addf %337, %340 : vector<8x128xf32>
    %cst_28 = arith.constant dense<0.000000e+00> : vector<128xf32>
    %342 = vector.multi_reduction <add>, %341, %cst_28 [0] : vector<8x128xf32> to vector<128xf32>
    %343 = vector.shape_cast %342 : vector<128xf32> to vector<1x128xf32>
    %344 = arith.mulf %57, %65 : vector<16x64xf32>
    %345 = vector.extract_strided_slice %344 {offsets = [0, 0], sizes = [8, 64], strides = [1, 1]} : vector<16x64xf32> to vector<8x64xf32>
    %cst_29 = arith.constant dense<0.000000e+00> : vector<64xf32>
    %346 = vector.multi_reduction <add>, %345, %cst_29 [0] : vector<8x64xf32> to vector<64xf32>
    %347 = vector.shape_cast %346 : vector<64xf32> to vector<1x64xf32>
    %348 = vector.extract_strided_slice %344 {offsets = [8, 0], sizes = [8, 64], strides = [1, 1]} : vector<16x64xf32> to vector<8x64xf32>
    %cst_30 = arith.constant dense<0.000000e+00> : vector<64xf32>
    %349 = vector.multi_reduction <add>, %348, %cst_30 [0] : vector<8x64xf32> to vector<64xf32>
    %350 = vector.shape_cast %349 : vector<64xf32> to vector<1x64xf32>
    %351 = tpu.concatenate %347, %350 in 1 : vector<1x64xf32>, vector<1x64xf32> -> vector<1x128xf32>
    %352 = arith.mulf %8, %351 : vector<1x128xf32>
    %353 = arith.addf %343, %352 : vector<1x128xf32>
    %cst_31 = arith.constant 1.250000e-01 : f32
    %354 = vector.broadcast %cst_31 : f32 to vector<1x128xf32>
    %355 = arith.mulf %353, %354 : vector<1x128xf32>
    %356 = vector.extract_strided_slice %355 {offsets = [0, 0], sizes = [1, 64], strides = [1, 1]} : vector<1x128xf32> to vector<1x64xf32>
    %357 = vector.extract_strided_slice %355 {offsets = [0, 64], sizes = [1, 64], strides = [1, 1]} : vector<1x128xf32> to vector<1x64xf32>
    %358 = tpu.concatenate %356, %357 in 0 : vector<1x64xf32>, vector<1x64xf32> -> vector<2x64xf32>
    %359 = vector.extract_strided_slice %3 {offsets = [0, 0], sizes = [64, 32], strides = [1, 1]} : vector<112x32xf32> to vector<64x32xf32>
    %cst_32 = arith.constant dense<0.000000e+00> : vector<2x32xf32>
    %360 = tpu.matmul %358, %359, %cst_32 {dimension_numbers = #tpu.dot_dimension_numbers<[1], [0], [0], [1], [0, 0, 1, 1], [], []>} : vector<2x64xf32>, vector<64x32xf32>, vector<2x32xf32> -> vector<2x32xf32>
    %361 = vector.extract_strided_slice %3 {offsets = [64, 0], sizes = [32, 16], strides = [1, 1]} : vector<112x32xf32> to vector<32x16xf32>
    %cst_33 = arith.constant dense<0.000000e+00> : vector<2x16xf32>
    %362 = tpu.matmul %360, %361, %cst_33 {dimension_numbers = #tpu.dot_dimension_numbers<[1], [0], [0], [1], [0, 0, 1, 1], [], []>} : vector<2x32xf32>, vector<32x16xf32>, vector<2x16xf32> -> vector<2x16xf32>
    %363 = vector.broadcast %9 : vector<1x16xf32> to vector<2x16xf32>
    %364 = arith.addf %362, %363 : vector<2x16xf32>
    %365 = math.tanh %364 : vector<2x16xf32>
    %cst_34 = arith.constant 0.000000e+00 : f32
    %366 = vector.broadcast %cst_34 : f32 to vector<2x16xf32>
    %367 = arith.cmpf ogt, %365, %366 : vector<2x16xf32>
    %368 = math.exp %365 : vector<2x16xf32>
    %cst_35 = arith.constant 1.000000e+00 : f32
    %369 = vector.broadcast %cst_35 : f32 to vector<2x16xf32>
    %370 = arith.subf %368, %369 : vector<2x16xf32>
    %371 = arith.select %367, %365, %370 : vector<2x16xi1>, vector<2x16xf32>
    %372 = vector.extract_strided_slice %3 {offsets = [96, 0], sizes = [16, 8], strides = [1, 1]} : vector<112x32xf32> to vector<16x8xf32>
    %cst_36 = arith.constant dense<0.000000e+00> : vector<2x8xf32>
    %373 = tpu.matmul %371, %372, %cst_36 {dimension_numbers = #tpu.dot_dimension_numbers<[1], [0], [0], [1], [0, 0, 1, 1], [], []>} : vector<2x16xf32>, vector<16x8xf32>, vector<2x8xf32> -> vector<2x8xf32>
    %374 = vector.broadcast %10 : vector<1x8xf32> to vector<2x8xf32>
    %375 = arith.addf %373, %374 : vector<2x8xf32>
    %cst_37 = arith.constant 0.000000e+00 : f32
    %376 = vector.broadcast %cst_37 : f32 to vector<2x104xf32>
    %377 = tpu.concatenate %371, %375, %376 in 1 : vector<2x16xf32>, vector<2x8xf32>, vector<2x104xf32> -> vector<2x128xf32>
    %c0_38 = arith.constant 0 : index
    %c0_39 = arith.constant 0 : index
    %378 = vector.load %arg5[%c0_38, %c0_39] : memref<2x128xf32, #tpu.memory_space<vmem>>, vector<2x128xf32>
    tpu.vector_store %arg5[%c0_38, %c0_39], %377 {strides = array<i32>} : memref<2x128xf32, #tpu.memory_space<vmem>>, vector<2x128xf32>,
    return
  }
}

</mosaic_0001>

<llo_original>
// kernel: mamba_g2g_forward.1
$region0: #{mamba_g2g_forward.1}
  #allocation0 [shape = 'u32[]', space=smem, size = 0x4, offset = 0x4, fixed_abs, tag = 'smem constant byte address 0x4 - core index']
  #allocation1 [shape = 'u32[72,128]{1,0:T(1,128)}', space=vmem, size = 0x9000, scoped, tag = 'internal scratch']
  %s0 = inlined_call_operand.vmem [shape: f32[16,32], index: 0, kind: input, shape index: {}]
  %s1 = inlined_call_operand.vmem [shape: f32[32,128], index: 1, kind: input, shape index: {}]
  %s2 = inlined_call_operand.vmem [shape: f32[16,128], index: 2, kind: input, shape index: {}]
  %s3 = inlined_call_operand.vmem [shape: f32[32,64], index: 3, kind: input, shape index: {}]
  %s4 = inlined_call_operand.vmem [shape: f32[112,32], index: 4, kind: input, shape index: {}]
  %s5 = inlined_call_operand.vmem [shape: f32[2,128], index: 5, kind: output, shape index: {}]
  %s6 = sld [smem:[#allocation0]]
  $region30: #{mamba_g2g_forward.1} parent=0
    _
  %s8 = ssub.s32 1, %s6
  %s9 = scalar_select 0, %s8, %s6
  // Predicated region
  $region2: #{mamba_g2g_forward.1} parent=0 // pred_check
    _
  $region3: #{mamba_g2g_forward.1} parent=0 // pred_check_branch
    %11 = sbr.rel (0) target = $region5
  $region4: #{mamba_g2g_forward.1} parent=0 // pred_region
    _
  $region5: #{mamba_g2g_forward.1} parent=0 // pred_fallthru
    _
  // Predicated region
  $region6: #{mamba_g2g_forward.1} parent=0 // pred_check
    _
  $region7: #{mamba_g2g_forward.1} parent=0 // pred_check_branch
    %13 = sbr.rel (0) target = $region9
  $region8: #{mamba_g2g_forward.1} parent=0 // pred_region
    _
  $region9: #{mamba_g2g_forward.1} parent=0 // pred_fallthru
    _
  // Predicated region
  $region10: #{mamba_g2g_forward.1} parent=0 // pred_check
    _
  $region11: #{mamba_g2g_forward.1} parent=0 // pred_check_branch
    %15 = sbr.rel (0) target = $region13
  $region12: #{mamba_g2g_forward.1} parent=0 // pred_region
    _
  $region13: #{mamba_g2g_forward.1} parent=0 // pred_fallthru
    _
  // Predicated region
  $region14: #{mamba_g2g_forward.1} parent=0 // pred_check
    _
  $region15: #{mamba_g2g_forward.1} parent=0 // pred_check_branch
    %17 = sbr.rel (0) target = $region17
  $region16: #{mamba_g2g_forward.1} parent=0 // pred_region
    _
  $region17: #{mamba_g2g_forward.1} parent=0 // pred_fallthru
    _
  // Predicated region
  $region18: #{mamba_g2g_forward.1} parent=0 // pred_check
    _
  $region19: #{mamba_g2g_forward.1} parent=0 // pred_check_branch
    %19 = sbr.rel (0) target = $region21
  $region20: #{mamba_g2g_forward.1} parent=0 // pred_region
    _
  $region21: #{mamba_g2g_forward.1} parent=0 // pred_fallthru
    _
  %v20 = vld [vmem:[%s0] sm:$0xff]
  %v21 = vld [vmem:[%s0 + $0x8] sm:$0xff]
  %v22 = vld [vmem:[%s2] sm:$0xff]
  %v23 = vld [vmem:[%s2 + $0x8] sm:$0xff]
  %v24 = vld [vmem:[%s3] sm:$0xff]
  %v25 = vld [vmem:[%s3 + $0x8] sm:$0xff]
  %v26 = vld [vmem:[%s3 + $0x10] sm:$0xff]
  %v27 = vld [vmem:[%s3 + $0x18] sm:$0xff]
  %v28 = vld [vmem:[%s4] sm:$0xff]
  %v29 = vld [vmem:[%s4 + $0x8] sm:$0xff]
  %v30 = vld [vmem:[%s4 + $0x10] sm:$0xff]
  %v31 = vld [vmem:[%s4 + $0x18] sm:$0xff]
  %v32 = vld [vmem:[%s4 + $0x20] sm:$0xff]
  %v33 = vld [vmem:[%s4 + $0x28] sm:$0xff]
  %v34 = vld [vmem:[%s4 + $0x30] sm:$0xff]
  %v35 = vld [vmem:[%s4 + $0x38] sm:$0xff]
  %v36 = vld [vmem:[%s4 + $0x40] sm:$0xff]
  %v37 = vld [vmem:[%s4 + $0x48] sm:$0xff]
  %v38 = vld [vmem:[%s4 + $0x50] sm:$0xff]
  %v39 = vld [vmem:[%s4 + $0x58] sm:$0xff]
  %v40 = vld [vmem:[%s4 + $0x60] sm:$0xff]
  %v41 = vld [vmem:[%s4 + $0x68] sm:$0xff]
  %v42 = vld [vmem:[%s1] sm:$0xff]
  %v43 = vld [vmem:[%s1 + $0x8] sm:$0xff]
  %v44 = vld [vmem:[%s1 + $0x10] sm:$0xff]
  %v45 = vld [vmem:[%s1 + $0x18] sm:$0xff]
  %vm46 = vcmask 261120
  %v48 = vsel %vm46, %v20, 0
  %v51 = vsel %vm46, %v21, 0
  %53 = vmatpush.msra.mxu0 0.0
  %54 = vmatpush.msra.mxu0 0.0
  %55 = vmatpush.msra.mxu0 0.0
  %56 = vmatpush.msra.mxu0 0.0
  %57 = vmatpush.msra.mxu0 0.0
  %58 = vmatpush.msra.mxu0 0.0
  %59 = vmatpush.msra.mxu0 0.0
  %60 = vmatpush.msra.mxu0 0.0
  %61 = vmatpush.msra.mxu0 0.0
  %62 = vmatpush.msra.mxu0 0.0
  %63 = vmatpush.msra.mxu0 0.0
  %64 = vmatpush.msra.mxu0 0.0
  %65 = vmatpush.msra.mxu0 %v45
  %66 = vmatpush.msra.mxu0 %v44
  %67 = vmatpush.msra.mxu0 %v43
  %68 = vmatpush.msra.mxu0 %v42
  %69 = vmatmul.f32.gmra.mxu0 %v48
  %v70 = vpop.f32.mrf.mxu0
  %v71 = vadd.f32 0.0, %v70
  %72 = vmatmul.f32.gmra.mxu0 %v51
  %v73 = vpop.f32.mrf.mxu0
  %v74 = vadd.f32 0.0, %v73
  %75 = vdwg.mxu0
  %v76 = vlaneseq
  %v77 = vshrl.u32 %v76, 7
  %v78 = vadd.s32 %v77, 8
  %v79 = vand.u32 %v77, 7
  %v80 = vand.u32 %v78, 7
  %v81 = vperm.slane %v23, 3
  %v82 = vmul.f32 %v71, %v81
  %v83 = vmul.f32 %v74, %v81
  %v84 = vrot.slane %v71, 5
  %v85 = vrot.slane %v74, 5
  %vm86 = vcmp.lt.s32.totalorder %v77, 3
  %v87 = vsel %vm86, %v84, %v85
  %v88 = vsel %vm86, %v85, %v84
  %vm89 = vcmp.ge.s32.totalorder %v79, 3
  %vm90 = vcmp.ge.s32.totalorder %v80, 3
  %v91 = vsel %vm89, %v88, 0.0
  %v92 = vsel %vm90, %v87, 0.0
  %v93 = vperm.slane %v23, 0
  %v94 = vmul.f32 %v91, %v93
  %v95 = vmul.f32 %v92, %v93
  %v96 = vadd.f32 %v82, %v94
  %v97 = vadd.f32 %v83, %v95
  %v98 = vrot.slane %v71, 6
  %v99 = vrot.slane %v74, 6
  %vm100 = vcmp.lt.s32.totalorder %v77, 2
  %v101 = vsel %vm100, %v98, %v99
  %v102 = vsel %vm100, %v99, %v98
  %vm103 = vcmp.ge.s32.totalorder %v79, 2
  %vm104 = vcmp.ge.s32.totalorder %v80, 2
  %v105 = vsel %vm103, %v102, 0.0
  %v106 = vsel %vm104, %v101, 0.0
  %v107 = vperm.slane %v23, 1
  %v108 = vmul.f32 %v105, %v107
  %v109 = vmul.f32 %v106, %v107
  %v110 = vadd.f32 %v96, %v108
  %v111 = vadd.f32 %v97, %v109
  %v112 = vrot.slane %v71, 7
  %v113 = vrot.slane %v74, 7
  %vm114 = vcmp.lt.s32.totalorder %v77, 1
  %v115 = vsel %vm114, %v112, %v113
  %v116 = vsel %vm114, %v113, %v112
  %vm117 = vcmp.ge.s32.totalorder %v79, 1
  %vm118 = vcmp.ge.s32.totalorder %v80, 1
  %v119 = vsel %vm117, %v116, 0.0
  %v120 = vsel %vm118, %v115, 0.0
  %v121 = vperm.slane %v23, 2
  %v122 = vmul.f32 %v119, %v121
  %v123 = vmul.f32 %v120, %v121
  %v124 = vadd.f32 %v110, %v122
  %v125 = vadd.f32 %v111, %v123
  %v126 = vperm.slane %v23, 4
  %v127 = vadd.f32 %v124, %v126
  %v128 = vadd.f32 %v125, %v126
  %v129 = vsub.f32 0.0, %v127
  %v130 = vsub.f32 0.0, %v128
  %v131 = vmul.f32 %v129, 1.442695
  %v132 = vpow.pop %v131
  %v133 = vmul.f32 %v130, 1.442695
  %v134 = vpow.pop %v133
  %v135 = vadd.f32 %v132, 1.0
  %v136 = vadd.f32 %v134, 1.0
  %v137 = vrcp.pop %v135
  %v138 = vmul.f32 %v135, %v137
  %v139 = vsub.f32 1.0, %v138
  %v140 = vmul.f32 %v137, %v139
  %v141 = vadd.f32 %v137, %v140
  %vm142 = vweird.f32 %v135
  %vm143 = vweird.f32 %v137
  %vm144 = vmor %vm142, %vm143
  %v145 = vsel %vm144, %v137, %v141
  %v146 = vand.u32 2147483647, %v135
  %vm147 = vcmp.eq.f32.partialorder %v146, 8.507059e+37
  %v148 = vand.u32 %v135, 2147483648
  %v149 = vor.u32 1.1754944e-38, %v148
  %v150 = vsel %vm147, %v149, %v145
  %v151 = vmul.f32 1.0, %v150
  %v152 = vrcp.pop %v136
  %v153 = vmul.f32 %v136, %v152
  %v154 = vsub.f32 1.0, %v153
  %v155 = vmul.f32 %v152, %v154
  %v156 = vadd.f32 %v152, %v155
  %vm157 = vweird.f32 %v136
  %vm158 = vweird.f32 %v152
  %vm159 = vmor %vm157, %vm158
  %v160 = vsel %vm159, %v152, %v156
  %v161 = vand.u32 2147483647, %v136
  %vm162 = vcmp.eq.f32.partialorder %v161, 8.507059e+37
  %v163 = vand.u32 %v136, 2147483648
  %v164 = vor.u32 1.1754944e-38, %v163
  %v165 = vsel %vm162, %v164, %v160
  %v166 = vmul.f32 1.0, %v165
  %v167 = vmul.f32 %v127, %v151
  %v168 = vmul.f32 %v128, %v166
  %v169 = vsub.f32 0.0, %v71
  %v170 = vsub.f32 0.0, %v74
  %v171 = vmul.f32 %v169, 1.442695
  %v172 = vpow.pop %v171
  %v173 = vmul.f32 %v170, 1.442695
  %v174 = vpow.pop %v173
  %v175 = vadd.f32 %v172, 1.0
  %v176 = vadd.f32 %v174, 1.0
  %v177 = vrcp.pop %v175
  %v178 = vmul.f32 %v175, %v177
  %v179 = vsub.f32 1.0, %v178
  %v180 = vmul.f32 %v177, %v179
  %v181 = vadd.f32 %v177, %v180
  %vm182 = vweird.f32 %v175
  %vm183 = vweird.f32 %v177
  %vm184 = vmor %vm182, %vm183
  %v185 = vsel %vm184, %v177, %v181
  %v186 = vand.u32 2147483647, %v175
  %vm187 = vcmp.eq.f32.partialorder %v186, 8.507059e+37
  %v188 = vand.u32 %v175, 2147483648
  %v189 = vor.u32 1.1754944e-38, %v188
  %v190 = vsel %vm187, %v189, %v185
  %v191 = vmul.f32 1.0, %v190
  %v192 = vrcp.pop %v176
  %v193 = vmul.f32 %v176, %v192
  %v194 = vsub.f32 1.0, %v193
  %v195 = vmul.f32 %v192, %v194
  %v196 = vadd.f32 %v192, %v195
  %vm197 = vweird.f32 %v176
  %vm198 = vweird.f32 %v192
  %vm199 = vmor %vm197, %vm198
  %v200 = vsel %vm199, %v192, %v196
  %v201 = vand.u32 2147483647, %v176
  %vm202 = vcmp.eq.f32.partialorder %v201, 8.507059e+37
  %v203 = vand.u32 %v176, 2147483648
  %v204 = vor.u32 1.1754944e-38, %v203
  %v205 = vsel %vm202, %v204, %v200
  %v206 = vmul.f32 1.0, %v205
  %v207 = vmul.f32 %v71, %v191
  %v208 = vmul.f32 %v74, %v206
  %vm209 = vcmask 523264
  %v211 = vsel %vm209, %v167, 0
  %v214 = vsel %vm209, %v168, 0
  %v217 = vsel %vm209, %v24, 0
  %219 = vmatpush.xpose.msra.mxu0 0.0
  %220 = vmatpush.xpose.msra.mxu0 0.0
  %221 = vmatpush.xpose.msra.mxu0 0.0
  %222 = vmatpush.xpose.msra.mxu0 0.0
  %223 = vmatpush.xpose.msra.mxu0 0.0
  %224 = vmatpush.xpose.msra.mxu0 0.0
  %225 = vmatpush.xpose.msra.mxu0 0.0
  %226 = vmatpush.xpose.msra.mxu0 0.0
  %227 = vmatpush.xpose.msra.mxu0 0.0
  %228 = vmatpush.xpose.msra.mxu0 0.0
  %229 = vmatpush.xpose.msra.mxu0 0.0
  %230 = vmatpush.xpose.msra.mxu0 0.0
  %231 = vmatpush.xpose.msra.mxu0 0.0
  %232 = vmatpush.xpose.msra.mxu0 0.0
  %233 = vmatpush.xpose.msra.mxu0 0.0
  %234 = vmatpush.xpose.msra.mxu0 %v217
  %235 = vmatmul.f32.gmra.mxu0 %v211
  %v236 = vpop.f32.mrf.mxu0
  %v237 = vadd.f32 0.0, %v236
  %238 = vmatmul.f32.gmra.mxu0 %v214
  %v239 = vpop.f32.mrf.mxu0
  %v240 = vadd.f32 0.0, %v239
  %241 = vdwg.mxu0
  %v243 = vsel %vm209, %v25, 0
  %v246 = vsel %vm209, %v26, 0
  %248 = vmatpush.xpose.msra.mxu0 0.0
  %249 = vmatpush.xpose.msra.mxu0 0.0
  %250 = vmatpush.xpose.msra.mxu0 0.0
  %251 = vmatpush.xpose.msra.mxu0 0.0
  %252 = vmatpush.xpose.msra.mxu0 0.0
  %253 = vmatpush.xpose.msra.mxu0 0.0
  %254 = vmatpush.xpose.msra.mxu0 0.0
  %255 = vmatpush.xpose.msra.mxu0 0.0
  %256 = vmatpush.xpose.msra.mxu0 0.0
  %257 = vmatpush.xpose.msra.mxu0 0.0
  %258 = vmatpush.xpose.msra.mxu0 0.0
  %259 = vmatpush.xpose.msra.mxu0 0.0
  %260 = vmatpush.xpose.msra.mxu0 0.0
  %261 = vmatpush.xpose.msra.mxu0 0.0
  %262 = vmatpush.xpose.msra.mxu0 %v214
  %263 = vmatpush.xpose.msra.mxu0 %v211
  %264 = vmatmul.f32.gmra.mxu0 %v243
  %v265 = vpop.f32.mrf.mxu0
  %v266 = vadd.f32 0.0, %v265
  %267 = vmatmul.f32.gmra.mxu0 %v246
  %v268 = vpop.f32.mrf.mxu0
  %v269 = vadd.f32 0.0, %v268
  %270 = vdwg.mxu0
  %v271 = vperm.slane %v23, 5
  %vm272 = vcmask 15360
  %v274 = vsel %vm272, %v237, 0
  %v277 = vsel %vm272, %v240, 0
  %vm279 = vcmask 1041408
  %v281 = vsel %vm279, %v27, 0
  %283 = vmatpush.msra.mxu0 0.0
  %284 = vmatpush.msra.mxu0 0.0
  %285 = vmatpush.msra.mxu0 0.0
  %286 = vmatpush.msra.mxu0 0.0
  %287 = vmatpush.msra.mxu0 0.0
  %288 = vmatpush.msra.mxu0 0.0
  %289 = vmatpush.msra.mxu0 0.0
  %290 = vmatpush.msra.mxu0 0.0
  %291 = vmatpush.msra.mxu0 0.0
  %292 = vmatpush.msra.mxu0 0.0
  %293 = vmatpush.msra.mxu0 0.0
  %294 = vmatpush.msra.mxu0 0.0
  %295 = vmatpush.msra.mxu0 0.0
  %296 = vmatpush.msra.mxu0 0.0
  %297 = vmatpush.msra.mxu0 0.0
  %298 = vmatpush.msra.mxu0 %v281
  %299 = vmatmul.f32.gmra.mxu0 %v274
  %v300 = vpop.f32.mrf.mxu0
  %v301 = vadd.f32 %v271, %v300
  %302 = vmatmul.f32.gmra.mxu0 %v277
  %v303 = vpop.f32.mrf.mxu0
  %v304 = vadd.f32 %v271, %v303
  %305 = vdwg.mxu0
  %vm306 = vcmp.gt.f32.partialorder %v301, 20.0
  %vm307 = vcmp.gt.f32.partialorder %v304, 20.0
  %v308 = vmul.f32 %v301, 1.442695
  %v309 = vpow.pop %v308
  %v310 = vmul.f32 %v304, 1.442695
  %v311 = vpow.pop %v310
  %v312 = vadd.f32 %v309, 1.0
  %v313 = vadd.f32 %v311, 1.0
  %v314 = vlog2.pop %v312
  %v315 = vmul.f32 %v314, 0.6931472
  %v316 = vlog2.pop %v313
  %v317 = vmul.f32 %v316, 0.6931472
  %v318 = vsel %vm306, %v301, %v315
  %v319 = vsel %vm307, %v304, %v317
  %v320 = vmul.f32 %v318, %v167
  %v321 = vmul.f32 %v319, %v168
  %323 = vrot.lane.b32.xlu0 %v319, 64
  %v324 = vpop.permute.xlu0 %323
  %v326 = vsel %vm209, %v318, %v324
  %v327 = vperm.slane %v326, 0
  %v328 = vmul.f32 %v22, %v327
  %v329 = vmul.f32 %v328, 1.442695
  %v330 = vpow.pop %v329
  %332 = vset.pattern.permute.xlu0 0
  %333 = vperm.xlu0 %332, %v266
  %v334 = vpop.permute.xlu0 %333
  %v336 = vperm.slane %v320, 0
  %v337 = vmul.f32 %v334, %v336
  %338 = vset.pattern.permute.xlu0 8
  %339 = vperm.xlu0 %338, %v266
  %v340 = vpop.permute.xlu0 %339
  %v342 = vperm.slane %v321, 0
  %v343 = vmul.f32 %v340, %v342
  %345 = vrot.lane.b32.xlu0 %v343, 64
  %v346 = vpop.permute.xlu0 %345
  %v348 = vsel %vm209, %v337, %v346
  %350 = vset.pattern.permute.xlu0 0
  %351 = vperm.xlu0 %350, %v269
  %v352 = vpop.permute.xlu0 %351
  %v354 = vperm.slane %v207, 0
  %v355 = vmul.f32 %v352, %v354
  %356 = vset.pattern.permute.xlu0 8
  %357 = vperm.xlu0 %356, %v269
  %v358 = vpop.permute.xlu0 %357
  %v360 = vperm.slane %v208, 0
  %v361 = vmul.f32 %v358, %v360
  %363 = vrot.lane.b32.xlu0 %v355, 64
  %v364 = vpop.permute.xlu0 %363
  %v366 = vsel %vm209, %v364, %v361
  %v367 = vperm.slane %v326, 1
  %v368 = vmul.f32 %v22, %v367
  %v369 = vmul.f32 %v368, 1.442695
  %v370 = vpow.pop %v369
  %371 = vset.pattern.permute.xlu0 1
  %372 = vperm.xlu0 %371, %v266
  %v373 = vpop.permute.xlu0 %372
  %v375 = vperm.slane %v320, 1
  %v376 = vmul.f32 %v373, %v375
  %377 = vset.pattern.permute.xlu0 9
  %378 = vperm.xlu0 %377, %v266
  %v379 = vpop.permute.xlu0 %378
  %v381 = vperm.slane %v321, 1
  %v382 = vmul.f32 %v379, %v381
  %384 = vrot.lane.b32.xlu0 %v382, 64
  %v385 = vpop.permute.xlu0 %384
  %v387 = vsel %vm209, %v376, %v385
  %388 = vset.pattern.permute.xlu0 1
  %389 = vperm.xlu0 %388, %v269
  %v390 = vpop.permute.xlu0 %389
  %v392 = vperm.slane %v207, 1
  %v393 = vmul.f32 %v390, %v392
  %394 = vset.pattern.permute.xlu0 9
  %395 = vperm.xlu0 %394, %v269
  %v396 = vpop.permute.xlu0 %395
  %v398 = vperm.slane %v208, 1
  %v399 = vmul.f32 %v396, %v398
  %401 = vrot.lane.b32.xlu0 %v393, 64
  %v402 = vpop.permute.xlu0 %401
  %v404 = vsel %vm209, %v402, %v399
  %v405 = vperm.slane %v326, 2
  %v406 = vmul.f32 %v22, %v405
  %v407 = vmul.f32 %v406, 1.442695
  %v408 = vpow.pop %v407
  %409 = vset.pattern.permute.xlu0 2
  %410 = vperm.xlu0 %409, %v266
  %v411 = vpop.permute.xlu0 %410
  %v413 = vperm.slane %v320, 2
  %v414 = vmul.f32 %v411, %v413
  %415 = vset.pattern.permute.xlu0 10
  %416 = vperm.xlu0 %415, %v266
  %v417 = vpop.permute.xlu0 %416
  %v419 = vperm.slane %v321, 2
  %v420 = vmul.f32 %v417, %v419
  %422 = vrot.lane.b32.xlu0 %v420, 64
  %v423 = vpop.permute.xlu0 %422
  %v425 = vsel %vm209, %v414, %v423
  %426 = vset.pattern.permute.xlu0 2
  %427 = vperm.xlu0 %426, %v269
  %v428 = vpop.permute.xlu0 %427
  %v430 = vperm.slane %v207, 2
  %v431 = vmul.f32 %v428, %v430
  %432 = vset.pattern.permute.xlu0 10
  %433 = vperm.xlu0 %432, %v269
  %v434 = vpop.permute.xlu0 %433
  %v436 = vperm.slane %v208, 2
  %v437 = vmul.f32 %v434, %v436
  %439 = vrot.lane.b32.xlu0 %v431, 64
  %v440 = vpop.permute.xlu0 %439
  %v442 = vsel %vm209, %v440, %v437
  %v443 = vperm.slane %v326, 3
  %v444 = vmul.f32 %v22, %v443
  %v445 = vmul.f32 %v444, 1.442695
  %v446 = vpow.pop %v445
  %447 = vset.pattern.permute.xlu0 3
  %448 = vperm.xlu0 %447, %v266
  %v449 = vpop.permute.xlu0 %448
  %v451 = vperm.slane %v320, 3
  %v452 = vmul.f32 %v449, %v451
  %453 = vset.pattern.permute.xlu0 11
  %454 = vperm.xlu0 %453, %v266
  %v455 = vpop.permute.xlu0 %454
  %v457 = vperm.slane %v321, 3
  %v458 = vmul.f32 %v455, %v457
  %460 = vrot.lane.b32.xlu0 %v458, 64
  %v461 = vpop.permute.xlu0 %460
  %v463 = vsel %vm209, %v452, %v461
  %464 = vset.pattern.permute.xlu0 3
  %465 = vperm.xlu0 %464, %v269
  %v466 = vpop.permute.xlu0 %465
  %v468 = vperm.slane %v207, 3
  %v469 = vmul.f32 %v466, %v468
  %470 = vset.pattern.permute.xlu0 11
  %471 = vperm.xlu0 %470, %v269
  %v472 = vpop.permute.xlu0 %471
  %v474 = vperm.slane %v208, 3
  %v475 = vmul.f32 %v472, %v474
  %477 = vrot.lane.b32.xlu0 %v469, 64
  %v478 = vpop.permute.xlu0 %477
  %v480 = vsel %vm209, %v478, %v475
  %v481 = vperm.slane %v326, 4
  %v482 = vmul.f32 %v22, %v481
  %v483 = vmul.f32 %v482, 1.442695
  %v484 = vpow.pop %v483
  %485 = vset.pattern.permute.xlu0 4
  %486 = vperm.xlu0 %485, %v266
  %v487 = vpop.permute.xlu0 %486
  %v489 = vperm.slane %v320, 4
  %v490 = vmul.f32 %v487, %v489
  %491 = vset.pattern.permute.xlu0 12
  %492 = vperm.xlu0 %491, %v266
  %v493 = vpop.permute.xlu0 %492
  %v495 = vperm.slane %v321, 4
  %v496 = vmul.f32 %v493, %v495
  %498 = vrot.lane.b32.xlu0 %v496, 64
  %v499 = vpop.permute.xlu0 %498
  %v501 = vsel %vm209, %v490, %v499
  %502 = vset.pattern.permute.xlu0 4
  %503 = vperm.xlu0 %502, %v269
  %v504 = vpop.permute.xlu0 %503
  %v506 = vperm.slane %v207, 4
  %v507 = vmul.f32 %v504, %v506
  %508 = vset.pattern.permute.xlu0 12
  %509 = vperm.xlu0 %508, %v269
  %v510 = vpop.permute.xlu0 %509
  %v512 = vperm.slane %v208, 4
  %v513 = vmul.f32 %v510, %v512
  %515 = vrot.lane.b32.xlu0 %v507, 64
  %v516 = vpop.permute.xlu0 %515
  %v518 = vsel %vm209, %v516, %v513
  %v519 = vperm.slane %v326, 5
  %v520 = vmul.f32 %v22, %v519
  %v521 = vmul.f32 %v520, 1.442695
  %v522 = vpow.pop %v521
  %523 = vset.pattern.permute.xlu0 5
  %524 = vperm.xlu0 %523, %v266
  %v525 = vpop.permute.xlu0 %524
  %v527 = vperm.slane %v320, 5
  %v528 = vmul.f32 %v525, %v527
  %529 = vset.pattern.permute.xlu0 13
  %530 = vperm.xlu0 %529, %v266
  %v531 = vpop.permute.xlu0 %530
  %v533 = vperm.slane %v321, 5
  %v534 = vmul.f32 %v531, %v533
  %536 = vrot.lane.b32.xlu0 %v534, 64
  %v537 = vpop.permute.xlu0 %536
  %v539 = vsel %vm209, %v528, %v537
  %540 = vset.pattern.permute.xlu0 5
  %541 = vperm.xlu0 %540, %v269
  %v542 = vpop.permute.xlu0 %541
  %v544 = vperm.slane %v207, 5
  %v545 = vmul.f32 %v542, %v544
  %546 = vset.pattern.permute.xlu0 13
  %547 = vperm.xlu0 %546, %v269
  %v548 = vpop.permute.xlu0 %547
  %v550 = vperm.slane %v208, 5
  %v551 = vmul.f32 %v548, %v550
  %553 = vrot.lane.b32.xlu0 %v545, 64
  %v554 = vpop.permute.xlu0 %553
  %v556 = vsel %vm209, %v554, %v551
  %v557 = vperm.slane %v326, 6
  %v558 = vmul.f32 %v22, %v557
  %v559 = vmul.f32 %v558, 1.442695
  %v560 = vpow.pop %v559
  %561 = vset.pattern.permute.xlu0 6
  %562 = vperm.xlu0 %561, %v266
  %v563 = vpop.permute.xlu0 %562
  %v565 = vperm.slane %v320, 6
  %v566 = vmul.f32 %v563, %v565
  %567 = vset.pattern.permute.xlu0 14
  %568 = vperm.xlu0 %567, %v266
  %v569 = vpop.permute.xlu0 %568
  %v571 = vperm.slane %v321, 6
  %v572 = vmul.f32 %v569, %v571
  %574 = vrot.lane.b32.xlu0 %v572, 64
  %v575 = vpop.permute.xlu0 %574
  %v577 = vsel %vm209, %v566, %v575
  %578 = vset.pattern.permute.xlu0 6
  %579 = vperm.xlu0 %578, %v269
  %v580 = vpop.permute.xlu0 %579
  %v582 = vperm.slane %v207, 6
  %v583 = vmul.f32 %v580, %v582
  %584 = vset.pattern.permute.xlu0 14
  %585 = vperm.xlu0 %584, %v269
  %v586 = vpop.permute.xlu0 %585
  %v588 = vperm.slane %v208, 6
  %v589 = vmul.f32 %v586, %v588
  %591 = vrot.lane.b32.xlu0 %v583, 64
  %v592 = vpop.permute.xlu0 %591
  %v594 = vsel %vm209, %v592, %v589
  %v595 = vperm.slane %v326, 7
  %v596 = vmul.f32 %v22, %v595
  %v597 = vmul.f32 %v596, 1.442695
  %v598 = vpow.pop %v597
  %599 = vset.pattern.permute.xlu0 7
  %600 = vperm.xlu0 %599, %v266
  %v601 = vpop.permute.xlu0 %600
  %v603 = vperm.slane %v320, 7
  %v604 = vmul.f32 %v601, %v603
  %605 = vset.pattern.permute.xlu0 15
  %606 = vperm.xlu0 %605, %v266
  %v607 = vpop.permute.xlu0 %606
  %v609 = vperm.slane %v321, 7
  %v610 = vmul.f32 %v607, %v609
  %612 = vrot.lane.b32.xlu0 %v610, 64
  %v613 = vpop.permute.xlu0 %612
  %v615 = vsel %vm209, %v604, %v613
  %616 = vset.pattern.permute.xlu0 7
  %617 = vperm.xlu0 %616, %v269
  %v618 = vpop.permute.xlu0 %617
  %v620 = vperm.slane %v207, 7
  %v621 = vmul.f32 %v618, %v620
  %622 = vset.pattern.permute.xlu0 15
  %623 = vperm.xlu0 %622, %v269
  %v624 = vpop.permute.xlu0 %623
  %v626 = vperm.slane %v208, 7
  %v627 = vmul.f32 %v624, %v626
  %629 = vrot.lane.b32.xlu0 %v621, 64
  %v630 = vpop.permute.xlu0 %629
  %v632 = vsel %vm209, %v630, %v627
  %v633 = vmul.f32 %v330, 0.0
  %v634 = vadd.f32 %v633, %v348
  %v635 = vmul.f32 %v366, %v634
  %v636 = vadd.f32 %v635, 0.0
  %v637 = vmul.f32 %v370, %v634
  %v638 = vadd.f32 %v637, %v387
  %v639 = vmul.f32 %v404, %v638
  %v640 = vadd.f32 %v636, %v639
  %v641 = vmul.f32 %v408, %v638
  %v642 = vadd.f32 %v641, %v425
  %v643 = vmul.f32 %v442, %v642
  %v644 = vadd.f32 %v640, %v643
  %v645 = vmul.f32 %v446, %v642
  %v646 = vadd.f32 %v645, %v463
  %v647 = vmul.f32 %v480, %v646
  %v648 = vadd.f32 %v644, %v647
  %v649 = vmul.f32 %v484, %v646
  %v650 = vadd.f32 %v649, %v501
  %v651 = vmul.f32 %v518, %v650
  %v652 = vadd.f32 %v648, %v651
  %v653 = vmul.f32 %v522, %v650
  %v654 = vadd.f32 %v653, %v539
  %v655 = vmul.f32 %v556, %v654
  %v656 = vadd.f32 %v652, %v655
  %v657 = vmul.f32 %v560, %v654
  %v658 = vadd.f32 %v657, %v577
  %v659 = vmul.f32 %v594, %v658
  %v660 = vadd.f32 %v656, %v659
  %v661 = vmul.f32 %v598, %v658
  %v662 = vadd.f32 %v661, %v615
  %v663 = vmul.f32 %v632, %v662
  %v664 = vadd.f32 %v660, %v663
  %v665 = vrot.slane %v664, 4
  %v666 = vadd.f32 %v664, %v665
  %v667 = vrot.slane %v666, 2
  %v668 = vadd.f32 %v666, %v667
  %v669 = vrot.slane %v668, 1
  %v670 = vadd.f32 %v668, %v669
  %673 = vrot.lane.b32.xlu0 %v207, 64
  %v674 = vpop.permute.xlu0 %673
  %675 = vrot.lane.b32.xlu0 %v208, 64
  %v676 = vpop.permute.xlu0 %675
  %v679 = vmul.f32 %v167, %v674
  %v680 = vmul.f32 %v168, %v676
  %v681 = vsel %vm209, %v679, 0.0
  %v682 = vrot.slane %v681, 4
  %v683 = vadd.f32 %v681, %v682
  %v684 = vrot.slane %v683, 2
  %v685 = vadd.f32 %v683, %v684
  %v686 = vrot.slane %v685, 1
  %v687 = vadd.f32 %v685, %v686
  %v688 = vsel %vm209, %v680, 0.0
  %v689 = vrot.slane %v688, 4
  %v690 = vadd.f32 %v688, %v689
  %v691 = vrot.slane %v690, 2
  %v692 = vadd.f32 %v690, %v691
  %v693 = vrot.slane %v692, 1
  %v694 = vadd.f32 %v692, %v693
  %696 = vrot.lane.b32.xlu0 %v694, 64
  %v697 = vpop.permute.xlu0 %696
  %v699 = vsel %vm209, %v687, %v697
  %v701 = vrot.slane %v699, 2
  %v703 = vmul.f32 %v23, %v701
  %v704 = vadd.f32 %v670, %v703
  %v705 = vmul.f32 %v704, 0.125
  %v707 = vrot.slane %v705, 6
  %v709 = vrot.slane %v705, 5
  %710 = vrot.lane.b32.xlu0 %v709, 64
  %v711 = vpop.permute.xlu0 %710
  %vm713 = vcmask 1040384
  %v714 = vsel %vm713, %v707, %v711
  %v716 = vsel %vm209, %v714, 0
  %718 = vmatpush.msra.mxu0 0.0
  %719 = vmatpush.msra.mxu0 0.0
  %720 = vmatpush.msra.mxu0 0.0
  %721 = vmatpush.msra.mxu0 0.0
  %722 = vmatpush.msra.mxu0 0.0
  %723 = vmatpush.msra.mxu0 0.0
  %724 = vmatpush.msra.mxu0 0.0
  %725 = vmatpush.msra.mxu0 0.0
  %726 = vmatpush.msra.mxu0 %v35
  %727 = vmatpush.msra.mxu0 %v34
  %728 = vmatpush.msra.mxu0 %v33
  %729 = vmatpush.msra.mxu0 %v32
  %730 = vmatpush.msra.mxu0 %v31
  %731 = vmatpush.msra.mxu0 %v30
  %732 = vmatpush.msra.mxu0 %v29
  %733 = vmatpush.msra.mxu0 %v28
  %734 = vmatmul.f32.gmra.mxu0 %v716
  %v735 = vpop.f32.mrf.mxu0
  %v736 = vadd.f32 0.0, %v735
  %737 = vdwg.mxu0
  %v738 = vperm.slane %v23, 7
  %v740 = vsel %vm46, %v736, 0
  %742 = vmatpush.msra.mxu0 0.0
  %743 = vmatpush.msra.mxu0 0.0
  %744 = vmatpush.msra.mxu0 0.0
  %745 = vmatpush.msra.mxu0 0.0
  %746 = vmatpush.msra.mxu0 0.0
  %747 = vmatpush.msra.mxu0 0.0
  %748 = vmatpush.msra.mxu0 0.0
  %749 = vmatpush.msra.mxu0 0.0
  %750 = vmatpush.msra.mxu0 0.0
  %751 = vmatpush.msra.mxu0 0.0
  %752 = vmatpush.msra.mxu0 0.0
  %753 = vmatpush.msra.mxu0 0.0
  %754 = vmatpush.msra.mxu0 %v39
  %755 = vmatpush.msra.mxu0 %v38
  %756 = vmatpush.msra.mxu0 %v37
  %757 = vmatpush.msra.mxu0 %v36
  %758 = vmatmul.f32.gmra.mxu0 %v740
  %v759 = vpop.f32.mrf.mxu0
  %v760 = vadd.f32 %v738, %v759
  %761 = vdwg.mxu0
  %v762 = vtanh.pop %v760
  %vm763 = vcmp.gt.f32.partialorder %v762, 0.0
  %v764 = vmul.f32 %v762, 1.442695
  %v765 = vpow.pop %v764
  %v766 = vsub.f32 %v765, 1.0
  %v767 = vsel %vm763, %v762, %v766
  %769 = vrot.lane.b32.xlu0 %v738, 64
  %v770 = vpop.permute.xlu0 %769
  %vm772 = vcmask 130048
  %v774 = vsel %vm772, %v767, 0
  %776 = vmatpush.msra.mxu0 0.0
  %777 = vmatpush.msra.mxu0 0.0
  %778 = vmatpush.msra.mxu0 0.0
  %779 = vmatpush.msra.mxu0 0.0
  %780 = vmatpush.msra.mxu0 0.0
  %781 = vmatpush.msra.mxu0 0.0
  %782 = vmatpush.msra.mxu0 0.0
  %783 = vmatpush.msra.mxu0 0.0
  %784 = vmatpush.msra.mxu0 0.0
  %785 = vmatpush.msra.mxu0 0.0
  %786 = vmatpush.msra.mxu0 0.0
  %787 = vmatpush.msra.mxu0 0.0
  %788 = vmatpush.msra.mxu0 0.0
  %789 = vmatpush.msra.mxu0 0.0
  %790 = vmatpush.msra.mxu0 %v41
  %791 = vmatpush.msra.mxu0 %v40
  %792 = vmatmul.f32.gmra.mxu0 %v774
  %v793 = vpop.f32.mrf.mxu0
  %v794 = vadd.f32 %v770, %v793
  %795 = vdwg.mxu0
  %797 = vrot.lane.b32.xlu0 %v794, 16
  %v798 = vpop.permute.xlu0 %797
  %v800 = vsel %vm772, %v767, %v798
  %vm801 = vcmask 195584
  %v802 = vsel %vm801, %v800, 0.0
  %803 = vst [vmem:[%s5] sm:$0x3] %v802
  // Predicated region
  $region22: #{mamba_g2g_forward.1} parent=0 // pred_check
    _
  $region23: #{mamba_g2g_forward.1} parent=0 // pred_check_branch
    %805 = sbr.rel (0) target = $region25
  $region24: #{mamba_g2g_forward.1} parent=0 // pred_region
    _
  $region25: #{mamba_g2g_forward.1} parent=0 // pred_fallthru
    _
  // Predicated region
  $region26: #{mamba_g2g_forward.1} parent=0 // pred_check
    _
  $region27: #{mamba_g2g_forward.1} parent=0 // pred_check_branch
    %807 = sbr.rel (0) target = $region29
  $region28: #{mamba_g2g_forward.1} parent=0 // pred_region
    _
  $region29: #{mamba_g2g_forward.1} parent=0 // pred_fallthru
    _

</llo_original>
